<compile_context>
chip_gen: v5e
topology: v5e:2x2
jax: 0.10.0
libtpu: 0.0.40
codegen_flags: <defaults>
</compile_context>

<pallas_src>
import math

import jax
import jax.numpy as jnp
from jax import lax
from jax.experimental import pallas as pl
from jax.experimental.pallas import tpu as pltpu

# --- small, self-consistent hyperparameters (scaled-down module config) ---
BATCH = 2
BLOCK_SIZE = 128        # seq length T  (block_size scaled down, lane-friendly)
D_MODEL = 128           # d_model scaled down, multiple of 128 -> lane-dense
H = 4                   # heads
D_K = D_MODEL // H      # 32  (SelfAttention.__init__ sets d_k = d_model // h)
HD = H * D_K            # 128


def _mha_kernel(x_ref, wqkv_ref, wp_ref, bp_ref, o_ref, oheads_ref):
    """One grid step = one batch element.  Fused bf16 QKV projection, per-head
    causal softmax attention (f32 softmax math), head outputs parked in a bf16
    VMEM scratch, then a single full-depth (K=128) output projection."""
    _, T, D = x_ref.shape

    # Activations -> bf16 MXU operand (weights arrive pre-cast to bf16).
    x2 = x_ref[...].reshape(T, D).astype(jnp.bfloat16)

    # One fused QKV projection (K=128, N=384).  The 1/sqrt(C) scale is already
    # folded into the Q columns of wqkv, so no per-score multiply below.
    qkv = jnp.dot(x2, wqkv_ref[...], preferred_element_type=jnp.float32)

    # 128-lane-aligned slices; cast once to bf16 for the score / PV matmuls.
    q = qkv[:, 0 * HD:1 * HD].astype(jnp.bfloat16)
    k = qkv[:, 1 * HD:2 * HD].astype(jnp.bfloat16)
    v = qkv[:, 2 * HD:3 * HD].astype(jnp.bfloat16)

    # Causal mask shared across heads; finite "-inf" keeps exp well-behaved.
    row = lax.broadcasted_iota(jnp.int32, (T, T), 0)
    col = lax.broadcasted_iota(jnp.int32, (T, T), 1)
    causal = row >= col
    neg = jnp.float32(-1e30)

    for hd in range(H):                          # H is small & static
        lo = hd * D_K
        q_h = q[:, lo:lo + D_K]                  # (T, D_K) bf16
        k_h = k[:, lo:lo + D_K]
        v_h = v[:, lo:lo + D_K]

        # Scores (T, T): bf16 operands, f32 accumulate on the MXU.
        s = jnp.einsum('td,sd->ts', q_h, k_h,
                       preferred_element_type=jnp.float32)
        s = jnp.where(causal, s, neg)

        # Numerically-stable softmax in f32; divide -> EUP approx reciprocal.
        m = jnp.max(s, axis=-1, keepdims=True)
        e = jnp.exp(s - m)
        p = e * pl.reciprocal(jnp.sum(e, axis=-1, keepdims=True), approx=True)

        # PV matmul (bf16 p / v, f32 acc); park the head output in its scratch
        # lane band instead of keeping an accumulator live across the loop.
        o_h = jnp.dot(p.astype(jnp.bfloat16), v_h,
                      preferred_element_type=jnp.float32)
        oheads_ref[:, lo:lo + D_K] = o_h.astype(jnp.bfloat16)

    # Single full-depth (K=128) output projection + bias, lane-dense store.
    out = jnp.dot(oheads_ref[...], wp_ref[...],
                  preferred_element_type=jnp.float32)
    out = out + bp_ref[...].astype(jnp.float32)              # (1, D) broadcasts
    o_ref[...] = out.reshape(1, T, D).astype(o_ref.dtype)


def prepare_params(wq, wk, wv, wp, bp):
    """One-time weight fusion, hoisted out of the jitted per-call path:
      * per-head Q/K/V weights fused into one (D, 3*H*D_K) matrix laid out as
        [Q_h0..Q_h{H-1} | K_h0.. | V_h0..],
      * 1/sqrt(C) score scale folded into the Q columns,
      * matmul weights cast to bf16 for the MXU (bias stays f32)."""
    D = wq.shape[1]
    scale = 1.0 / math.sqrt(D_MODEL)             # 1/sqrt(C), C = d_model (as in source)
    w_q = jnp.transpose(wq, (1, 0, 2)).reshape(D, H * D_K) * scale
    w_k = jnp.transpose(wk, (1, 0, 2)).reshape(D, H * D_K)
    w_v = jnp.transpose(wv, (1, 0, 2)).reshape(D, H * D_K)
    w_qkv = jnp.concatenate([w_q, w_k, w_v], axis=1).astype(jnp.bfloat16)
    return w_qkv, wp.astype(jnp.bfloat16), bp.astype(jnp.float32)


@jax.jit
def multi_head_attention(x, w_qkv, wp, bp):
    """x: (B, T, D); w_qkv: (D, 3*H*D_K) bf16; wp: (H*d_k, D) bf16; bp: (1, D) f32."""
    B, T, D = x.shape
    return pl.pallas_call(
        _mha_kernel,
        out_shape=jax.ShapeDtypeStruct((B, T, D), x.dtype),
        grid_spec=pltpu.PrefetchScalarGridSpec(
            num_scalar_prefetch=0,
            grid=(B,),
            in_specs=[
                pl.BlockSpec((1, T, D), lambda b: (b, 0, 0)),      # x: per-batch tile
                pl.BlockSpec((D, 3 * HD), lambda b: (0, 0)),       # fused Wqkv (resident)
                pl.BlockSpec((HD, D), lambda b: (0, 0)),           # Wproj (resident)
                pl.BlockSpec((1, D), lambda b: (0, 0)),            # bias (resident)
            ],
            out_specs=pl.BlockSpec((1, T, D), lambda b: (b, 0, 0)),
            scratch_shapes=[pltpu.VMEM((T, HD), jnp.bfloat16)],    # head outputs
        ),
        compiler_params=pltpu.CompilerParams(
            dimension_semantics=("parallel",)),   # v7x: the 2 TCs split the batch
    )(x, w_qkv, wp, bp)


def _reference(x, wq, wk, wv, wp, bp):
    """Pure-JAX f32 reference matching the PyTorch forward (eval mode)."""
    B, T, D = x.shape
    hi = lax.Precision.HIGHEST
    tril = jnp.tril(jnp.ones((T, T)))
    outs = []
    for hd in range(H):
        q = jnp.einsum('btd,dk->btk', x, wq[hd], precision=hi)
        k = jnp.einsum('btd,dk->btk', x, wk[hd], precision=hi)
        v = jnp.einsum('btd,dk->btk', x, wv[hd], precision=hi)
        s = jnp.einsum('btk,bsk->bts', q, k, precision=hi) / math.sqrt(D)
        s = jnp.where(tril == 0, -jnp.inf, s)
        p = jax.nn.softmax(s, axis=-1)
        outs.append(jnp.einsum('bts,bsk->btk', p, v, precision=hi))
    concat = jnp.concatenate(outs, axis=-1)
    return jnp.einsum('btk,kd->btd', concat, wp, precision=hi) + bp


if __name__ == "__main__":
    key = jax.random.PRNGKey(0)
    kx, kq, kk, kv, kp, kb = jax.random.split(key, 6)

    x = jax.random.normal(kx, (BATCH, BLOCK_SIZE, D_MODEL), dtype=jnp.float32)

    # deterministic synthetic parameters (nn.Linear-style, pre-transposed)
    wq = 0.08 * jax.random.normal(kq, (H, D_MODEL, D_K), dtype=jnp.float32)
    wk = 0.08 * jax.random.normal(kk, (H, D_MODEL, D_K), dtype=jnp.float32)
    wv = 0.08 * jax.random.normal(kv, (H, D_MODEL, D_K), dtype=jnp.float32)
    wp = 0.08 * jax.random.normal(kp, (H * D_K, D_MODEL), dtype=jnp.float32)
    bp = 0.08 * jax.random.normal(kb, (1, D_MODEL), dtype=jnp.float32)

    # One-time weight fusion / scale fold / bf16 cast (outside the hot path).
    w_qkv, wp_b, bp_f = jax.block_until_ready(prepare_params(wq, wk, wv, wp, bp))

    out = multi_head_attention(x, w_qkv, wp_b, bp_f)
    out = jax.block_until_ready(out)

    ref = _reference(x, wq, wk, wv, wp, bp)
    assert out.shape == (BATCH, BLOCK_SIZE, D_MODEL)
    # Tolerance covers bf16 MXU operands (QKV / scores / PV / projection, f32
    # accumulation) plus the EUP approximate-reciprocal softmax; the reference
    # runs fully in f32 HIGHEST precision.
    err = float(jnp.max(jnp.abs(out - ref)))
    assert jnp.allclose(out, ref, atol=5e-2, rtol=5e-2), f"max abs err {err}"

    print("KERNEL_OK")
</pallas_src>

<mosaic_0001>
module attributes {stable_mosaic.version = 11 : i64} {
  func.func @_mha_kernel(%arg0: i32, %arg1: memref<1x128x128xf32, #tpu.memory_space<vmem>>, %arg2: memref<128x384xbf16, #tpu.memory_space<vmem>>, %arg3: memref<128x128xbf16, #tpu.memory_space<vmem>>, %arg4: memref<1x128xf32, #tpu.memory_space<vmem>>, %arg5: memref<1x128x128xf32, #tpu.memory_space<vmem>>, %arg6: memref<128x128xbf16, #tpu.memory_space<vmem>>) attributes {dimension_semantics = [#tpu.dimension_semantics<parallel>], iteration_bounds = array<i64: 2>, scalar_prefetch = 0 : i64, scratch_operands = 1 : i64, tpu.core_type = #tpu.core_type<tc>, window_params = [{transform_indices = @transform_0, window_bounds = array<i64: 1, 128, 128>}, {pipeline_mode = #tpu.pipeline_mode<synchronous>, transform_indices = @transform_1, window_bounds = array<i64: 128, 384>}, {pipeline_mode = #tpu.pipeline_mode<synchronous>, transform_indices = @transform_2, window_bounds = array<i64: 128, 128>}, {pipeline_mode = #tpu.pipeline_mode<synchronous>, transform_indices = @transform_3, window_bounds = array<i64: 1, 128>}, {transform_indices = @transform_4, window_bounds = array<i64: 1, 128, 128>}]} {
    %c0 = arith.constant 0 : index
    %c0_0 = arith.constant 0 : index
    %c0_1 = arith.constant 0 : index
    %0 = vector.load %arg1[%c0, %c0_0, %c0_1] : memref<1x128x128xf32, #tpu.memory_space<vmem>>, vector<1x128x128xf32>
    %1 = vector.shape_cast %0 : vector<1x128x128xf32> to vector<128x128xf32>
    %2 = arith.truncf %1 : vector<128x128xf32> to vector<128x128xbf16>
    %c0_2 = arith.constant 0 : index
    %c0_3 = arith.constant 0 : index
    %3 = vector.load %arg2[%c0_2, %c0_3] : memref<128x384xbf16, #tpu.memory_space<vmem>>, vector<128x384xbf16>
    %cst = arith.constant dense<0.000000e+00> : vector<128x384xf32>
    %4 = tpu.matmul %2, %3, %cst {dimension_numbers = #tpu.dot_dimension_numbers<[1], [0], [0], [1], [0, 0, 1, 1], [], []>} : vector<128x128xbf16>, vector<128x384xbf16>, vector<128x384xf32> -> vector<128x384xf32>
    %5 = vector.extract_strided_slice %4 {offsets = [0, 0], sizes = [128, 128], strides = [1, 1]} : vector<128x384xf32> to vector<128x128xf32>
    %6 = arith.truncf %5 : vector<128x128xf32> to vector<128x128xbf16>
    %7 = vector.extract_strided_slice %4 {offsets = [0, 128], sizes = [128, 128], strides = [1, 1]} : vector<128x384xf32> to vector<128x128xf32>
    %8 = arith.truncf %7 : vector<128x128xf32> to vector<128x128xbf16>
    %9 = vector.extract_strided_slice %4 {offsets = [0, 256], sizes = [128, 128], strides = [1, 1]} : vector<128x384xf32> to vector<128x128xf32>
    %10 = arith.truncf %9 : vector<128x128xf32> to vector<128x128xbf16>
    %11 = tpu.iota {dimensions = array<i32: 0>} : vector<128x128xi32>
    %12 = tpu.iota {dimensions = array<i32: 1>} : vector<128x128xi32>
    %13 = arith.cmpi sge, %11, %12 : vector<128x128xi32>
    %14 = vector.extract_strided_slice %6 {offsets = [0, 0], sizes = [128, 32], strides = [1, 1]} : vector<128x128xbf16> to vector<128x32xbf16>
    %15 = vector.extract_strided_slice %8 {offsets = [0, 0], sizes = [128, 32], strides = [1, 1]} : vector<128x128xbf16> to vector<128x32xbf16>
    %16 = vector.extract_strided_slice %10 {offsets = [0, 0], sizes = [128, 32], strides = [1, 1]} : vector<128x128xbf16> to vector<128x32xbf16>
    "tpu.trace_start"() <{level = 10 : i32, message = "td,sd->ts"}> : () -> ()
    %cst_4 = arith.constant dense<0.000000e+00> : vector<128x128xf32>
    %17 = tpu.matmul %14, %15, %cst_4 {dimension_numbers = #tpu.dot_dimension_numbers<[1], [1], [0], [0], [0, 0, 1, 0], [], []>} : vector<128x32xbf16>, vector<128x32xbf16>, vector<128x128xf32> -> vector<128x128xf32>
    %cst_5 = arith.constant -1.000000e+30 : f32
    "tpu.trace_stop"() : () -> ()
    %18 = vector.broadcast %cst_5 : f32 to vector<128x128xf32>
    %19 = arith.select %13, %17, %18 : vector<128x128xi1>, vector<128x128xf32>
    %cst_6 = arith.constant dense<0xFF800000> : vector<128xf32>
    %20 = vector.multi_reduction <maximumf>, %19, %cst_6 [1] : vector<128x128xf32> to vector<128xf32>
    %21 = vector.shape_cast %20 : vector<128xf32> to vector<128x1xf32>
    %22 = vector.broadcast %21 : vector<128x1xf32> to vector<128x128xf32>
    %23 = arith.subf %19, %22 : vector<128x128xf32>
    %24 = math.exp %23 : vector<128x128xf32>
    %cst_7 = arith.constant dense<0.000000e+00> : vector<128xf32>
    %25 = vector.multi_reduction <add>, %24, %cst_7 [1] : vector<128x128xf32> to vector<128xf32>
    %26 = vector.shape_cast %25 : vector<128xf32> to vector<128x1xf32>
    %27 = tpu.reciprocal %26 {approx = true} : vector<128x1xf32> -> vector<128x1xf32>
    %28 = vector.broadcast %27 : vector<128x1xf32> to vector<128x128xf32>
    %29 = arith.mulf %24, %28 : vector<128x128xf32>
    %30 = arith.truncf %29 : vector<128x128xf32> to vector<128x128xbf16>
    %cst_8 = arith.constant dense<0.000000e+00> : vector<128x32xf32>
    %31 = tpu.matmul %30, %16, %cst_8 {dimension_numbers = #tpu.dot_dimension_numbers<[1], [0], [0], [1], [0, 0, 1, 1], [], []>} : vector<128x128xbf16>, vector<128x32xbf16>, vector<128x32xf32> -> vector<128x32xf32>
    %32 = arith.truncf %31 : vector<128x32xf32> to vector<128x32xbf16>
    %c0_9 = arith.constant 0 : index
    %c0_10 = arith.constant 0 : index
    %33 = vector.load %arg6[%c0_9, %c0_10] : memref<128x128xbf16, #tpu.memory_space<vmem>>, vector<128x32xbf16>
    tpu.vector_store %arg6[%c0_9, %c0_10], %32 {strides = array<i32>} : memref<128x128xbf16, #tpu.memory_space<vmem>>, vector<128x32xbf16>,
    %34 = vector.extract_strided_slice %6 {offsets = [0, 32], sizes = [128, 32], strides = [1, 1]} : vector<128x128xbf16> to vector<128x32xbf16>
    %35 = vector.extract_strided_slice %8 {offsets = [0, 32], sizes = [128, 32], strides = [1, 1]} : vector<128x128xbf16> to vector<128x32xbf16>
    %36 = vector.extract_strided_slice %10 {offsets = [0, 32], sizes = [128, 32], strides = [1, 1]} : vector<128x128xbf16> to vector<128x32xbf16>
    "tpu.trace_start"() <{level = 10 : i32, message = "td,sd->ts"}> : () -> ()
    %cst_11 = arith.constant dense<0.000000e+00> : vector<128x128xf32>
    %37 = tpu.matmul %34, %35, %cst_11 {dimension_numbers = #tpu.dot_dimension_numbers<[1], [1], [0], [0], [0, 0, 1, 0], [], []>} : vector<128x32xbf16>, vector<128x32xbf16>, vector<128x128xf32> -> vector<128x128xf32>
    %cst_12 = arith.constant -1.000000e+30 : f32
    "tpu.trace_stop"() : () -> ()
    %38 = vector.broadcast %cst_12 : f32 to vector<128x128xf32>
    %39 = arith.select %13, %37, %38 : vector<128x128xi1>, vector<128x128xf32>
    %cst_13 = arith.constant dense<0xFF800000> : vector<128xf32>
    %40 = vector.multi_reduction <maximumf>, %39, %cst_13 [1] : vector<128x128xf32> to vector<128xf32>
    %41 = vector.shape_cast %40 : vector<128xf32> to vector<128x1xf32>
    %42 = vector.broadcast %41 : vector<128x1xf32> to vector<128x128xf32>
    %43 = arith.subf %39, %42 : vector<128x128xf32>
    %44 = math.exp %43 : vector<128x128xf32>
    %cst_14 = arith.constant dense<0.000000e+00> : vector<128xf32>
    %45 = vector.multi_reduction <add>, %44, %cst_14 [1] : vector<128x128xf32> to vector<128xf32>
    %46 = vector.shape_cast %45 : vector<128xf32> to vector<128x1xf32>
    %47 = tpu.reciprocal %46 {approx = true} : vector<128x1xf32> -> vector<128x1xf32>
    %48 = vector.broadcast %47 : vector<128x1xf32> to vector<128x128xf32>
    %49 = arith.mulf %44, %48 : vector<128x128xf32>
    %50 = arith.truncf %49 : vector<128x128xf32> to vector<128x128xbf16>
    %cst_15 = arith.constant dense<0.000000e+00> : vector<128x32xf32>
    %51 = tpu.matmul %50, %36, %cst_15 {dimension_numbers = #tpu.dot_dimension_numbers<[1], [0], [0], [1], [0, 0, 1, 1], [], []>} : vector<128x128xbf16>, vector<128x32xbf16>, vector<128x32xf32> -> vector<128x32xf32>
    %52 = arith.truncf %51 : vector<128x32xf32> to vector<128x32xbf16>
    %c0_16 = arith.constant 0 : index
    %c32 = arith.constant 32 : index
    %53 = vector.load %arg6[%c0_16, %c32] : memref<128x128xbf16, #tpu.memory_space<vmem>>, vector<128x32xbf16>
    tpu.vector_store %arg6[%c0_16, %c32], %52 {strides = array<i32>} : memref<128x128xbf16, #tpu.memory_space<vmem>>, vector<128x32xbf16>,
    %54 = vector.extract_strided_slice %6 {offsets = [0, 64], sizes = [128, 32], strides = [1, 1]} : vector<128x128xbf16> to vector<128x32xbf16>
    %55 = vector.extract_strided_slice %8 {offsets = [0, 64], sizes = [128, 32], strides = [1, 1]} : vector<128x128xbf16> to vector<128x32xbf16>
    %56 = vector.extract_strided_slice %10 {offsets = [0, 64], sizes = [128, 32], strides = [1, 1]} : vector<128x128xbf16> to vector<128x32xbf16>
    "tpu.trace_start"() <{level = 10 : i32, message = "td,sd->ts"}> : () -> ()
    %cst_17 = arith.constant dense<0.000000e+00> : vector<128x128xf32>
    %57 = tpu.matmul %54, %55, %cst_17 {dimension_numbers = #tpu.dot_dimension_numbers<[1], [1], [0], [0], [0, 0, 1, 0], [], []>} : vector<128x32xbf16>, vector<128x32xbf16>, vector<128x128xf32> -> vector<128x128xf32>
    %cst_18 = arith.constant -1.000000e+30 : f32
    "tpu.trace_stop"() : () -> ()
    %58 = vector.broadcast %cst_18 : f32 to vector<128x128xf32>
    %59 = arith.select %13, %57, %58 : vector<128x128xi1>, vector<128x128xf32>
    %cst_19 = arith.constant dense<0xFF800000> : vector<128xf32>
    %60 = vector.multi_reduction <maximumf>, %59, %cst_19 [1] : vector<128x128xf32> to vector<128xf32>
    %61 = vector.shape_cast %60 : vector<128xf32> to vector<128x1xf32>
    %62 = vector.broadcast %61 : vector<128x1xf32> to vector<128x128xf32>
    %63 = arith.subf %59, %62 : vector<128x128xf32>
    %64 = math.exp %63 : vector<128x128xf32>
    %cst_20 = arith.constant dense<0.000000e+00> : vector<128xf32>
    %65 = vector.multi_reduction <add>, %64, %cst_20 [1] : vector<128x128xf32> to vector<128xf32>
    %66 = vector.shape_cast %65 : vector<128xf32> to vector<128x1xf32>
    %67 = tpu.reciprocal %66 {approx = true} : vector<128x1xf32> -> vector<128x1xf32>
    %68 = vector.broadcast %67 : vector<128x1xf32> to vector<128x128xf32>
    %69 = arith.mulf %64, %68 : vector<128x128xf32>
    %70 = arith.truncf %69 : vector<128x128xf32> to vector<128x128xbf16>
    %cst_21 = arith.constant dense<0.000000e+00> : vector<128x32xf32>
    %71 = tpu.matmul %70, %56, %cst_21 {dimension_numbers = #tpu.dot_dimension_numbers<[1], [0], [0], [1], [0, 0, 1, 1], [], []>} : vector<128x128xbf16>, vector<128x32xbf16>, vector<128x32xf32> -> vector<128x32xf32>
    %72 = arith.truncf %71 : vector<128x32xf32> to vector<128x32xbf16>
    %c0_22 = arith.constant 0 : index
    %c64 = arith.constant 64 : index
    %73 = vector.load %arg6[%c0_22, %c64] : memref<128x128xbf16, #tpu.memory_space<vmem>>, vector<128x32xbf16>
    tpu.vector_store %arg6[%c0_22, %c64], %72 {strides = array<i32>} : memref<128x128xbf16, #tpu.memory_space<vmem>>, vector<128x32xbf16>,
    %74 = vector.extract_strided_slice %6 {offsets = [0, 96], sizes = [128, 32], strides = [1, 1]} : vector<128x128xbf16> to vector<128x32xbf16>
    %75 = vector.extract_strided_slice %8 {offsets = [0, 96], sizes = [128, 32], strides = [1, 1]} : vector<128x128xbf16> to vector<128x32xbf16>
    %76 = vector.extract_strided_slice %10 {offsets = [0, 96], sizes = [128, 32], strides = [1, 1]} : vector<128x128xbf16> to vector<128x32xbf16>
    "tpu.trace_start"() <{level = 10 : i32, message = "td,sd->ts"}> : () -> ()
    %cst_23 = arith.constant dense<0.000000e+00> : vector<128x128xf32>
    %77 = tpu.matmul %74, %75, %cst_23 {dimension_numbers = #tpu.dot_dimension_numbers<[1], [1], [0], [0], [0, 0, 1, 0], [], []>} : vector<128x32xbf16>, vector<128x32xbf16>, vector<128x128xf32> -> vector<128x128xf32>
    %cst_24 = arith.constant -1.000000e+30 : f32
    "tpu.trace_stop"() : () -> ()
    %78 = vector.broadcast %cst_24 : f32 to vector<128x128xf32>
    %79 = arith.select %13, %77, %78 : vector<128x128xi1>, vector<128x128xf32>
    %cst_25 = arith.constant dense<0xFF800000> : vector<128xf32>
    %80 = vector.multi_reduction <maximumf>, %79, %cst_25 [1] : vector<128x128xf32> to vector<128xf32>
    %81 = vector.shape_cast %80 : vector<128xf32> to vector<128x1xf32>
    %82 = vector.broadcast %81 : vector<128x1xf32> to vector<128x128xf32>
    %83 = arith.subf %79, %82 : vector<128x128xf32>
    %84 = math.exp %83 : vector<128x128xf32>
    %cst_26 = arith.constant dense<0.000000e+00> : vector<128xf32>
    %85 = vector.multi_reduction <add>, %84, %cst_26 [1] : vector<128x128xf32> to vector<128xf32>
    %86 = vector.shape_cast %85 : vector<128xf32> to vector<128x1xf32>
    %87 = tpu.reciprocal %86 {approx = true} : vector<128x1xf32> -> vector<128x1xf32>
    %88 = vector.broadcast %87 : vector<128x1xf32> to vector<128x128xf32>
    %89 = arith.mulf %84, %88 : vector<128x128xf32>
    %90 = arith.truncf %89 : vector<128x128xf32> to vector<128x128xbf16>
    %cst_27 = arith.constant dense<0.000000e+00> : vector<128x32xf32>
    %91 = tpu.matmul %90, %76, %cst_27 {dimension_numbers = #tpu.dot_dimension_numbers<[1], [0], [0], [1], [0, 0, 1, 1], [], []>} : vector<128x128xbf16>, vector<128x32xbf16>, vector<128x32xf32> -> vector<128x32xf32>
    %92 = arith.truncf %91 : vector<128x32xf32> to vector<128x32xbf16>
    %c0_28 = arith.constant 0 : index
    %c96 = arith.constant 96 : index
    %93 = vector.load %arg6[%c0_28, %c96] : memref<128x128xbf16, #tpu.memory_space<vmem>>, vector<128x32xbf16>
    tpu.vector_store %arg6[%c0_28, %c96], %92 {strides = array<i32>} : memref<128x128xbf16, #tpu.memory_space<vmem>>, vector<128x32xbf16>,
    %c0_29 = arith.constant 0 : index
    %c0_30 = arith.constant 0 : index
    %94 = vector.load %arg6[%c0_29, %c0_30] : memref<128x128xbf16, #tpu.memory_space<vmem>>, vector<128x128xbf16>
    %c0_31 = arith.constant 0 : index
    %c0_32 = arith.constant 0 : index
    %95 = vector.load %arg3[%c0_31, %c0_32] : memref<128x128xbf16, #tpu.memory_space<vmem>>, vector<128x128xbf16>
    %cst_33 = arith.constant dense<0.000000e+00> : vector<128x128xf32>
    %96 = tpu.matmul %94, %95, %cst_33 {dimension_numbers = #tpu.dot_dimension_numbers<[1], [0], [0], [1], [0, 0, 1, 1], [], []>} : vector<128x128xbf16>, vector<128x128xbf16>, vector<128x128xf32> -> vector<128x128xf32>
    %c0_34 = arith.constant 0 : index
    %c0_35 = arith.constant 0 : index
    %97 = vector.load %arg4[%c0_34, %c0_35] : memref<1x128xf32, #tpu.memory_space<vmem>>, vector<1x128xf32>
    %98 = vector.broadcast %97 : vector<1x128xf32> to vector<128x128xf32>
    %99 = arith.addf %96, %98 : vector<128x128xf32>
    %100 = vector.shape_cast %99 : vector<128x128xf32> to vector<1x128x128xf32>
    %c0_36 = arith.constant 0 : index
    %c0_37 = arith.constant 0 : index
    %c0_38 = arith.constant 0 : index
    %101 = vector.load %arg5[%c0_36, %c0_37, %c0_38] : memref<1x128x128xf32, #tpu.memory_space<vmem>>, vector<1x128x128xf32>
    tpu.vector_store %arg5[%c0_36, %c0_37, %c0_38], %100 {strides = array<i32>} : memref<1x128x128xf32, #tpu.memory_space<vmem>>, vector<1x128x128xf32>,
    return
  }
  func.func @transform_0(%arg0: i32) -> (i32, i32, i32) {
    %c0_i32 = arith.constant 0 : i32
    %c0_i32_0 = arith.constant 0 : i32
    %c0_i32_1 = arith.constant 0 : i32
    return %arg0, %c0_i32, %c0_i32_0 : i32, i32, i32
  }
  func.func @transform_1(%arg0: i32) -> (i32, i32) {
    %c0_i32 = arith.constant 0 : i32
    %c0_i32_0 = arith.constant 0 : i32
    %c0_i32_1 = arith.constant 0 : i32
    return %c0_i32, %c0_i32_0 : i32, i32
  }
  func.func @transform_2(%arg0: i32) -> (i32, i32) {
    %c0_i32 = arith.constant 0 : i32
    %c0_i32_0 = arith.constant 0 : i32
    %c0_i32_1 = arith.constant 0 : i32
    return %c0_i32, %c0_i32_0 : i32, i32
  }
  func.func @transform_3(%arg0: i32) -> (i32, i32) {
    %c0_i32 = arith.constant 0 : i32
    %c0_i32_0 = arith.constant 0 : i32
    %c0_i32_1 = arith.constant 0 : i32
    return %c0_i32, %c0_i32_0 : i32, i32
  }
  func.func @transform_4(%arg0: i32) -> (i32, i32, i32) {
    %c0_i32 = arith.constant 0 : i32
    %c0_i32_0 = arith.constant 0 : i32
    %c0_i32_1 = arith.constant 0 : i32
    return %arg0, %c0_i32, %c0_i32_0 : i32, i32, i32
  }
}

</mosaic_0001>

<llo_original>
// kernel: multi_head_attention.1
$region0: #{multi_head_attention.1}
  #allocation0 [shape = 'u32[]', space=smem, size = 0x4, offset = 0x4, fixed_abs, tag = 'smem constant byte address 0x4 - core index']
  #allocation1 [shape = 'u32[72,128]{1,0:T(1,128)}', space=vmem, size = 0x9000, scoped, tag = 'internal scratch']
  #allocation2 [shape = 'bf16[128,128]{1,0:T(8,128)(2,1)}', space=vmem, size = 0x8000, scoped, tag = 'scratch operand']
  %s0 = inlined_call_operand.hbm [shape: f32[2,128,128], index: 0, kind: input, shape index: {}]
  %s1 = inlined_call_operand.hbm [shape: bf16[128,384], index: 1, kind: input, shape index: {}]
  %s2 = inlined_call_operand.hbm [shape: bf16[128,128], index: 2, kind: input, shape index: {}]
  %s3 = inlined_call_operand.vmem [shape: f32[1,128], index: 3, kind: input, shape index: {}]
  %s4 = inlined_call_operand.hbm [shape: f32[2,128,128], index: 4, kind: output, shape index: {}]
  %s5 = sld [smem:[#allocation0]]
  $region61: #{multi_head_attention.1} parent=0
    _
  %s7 = ssub.s32 1, %s5
  %s8 = scalar_select 0, %s7, %s5
  $region1: #{multi_head_attention.1} parent=0
    #allocation3 [shape = 'u8[131072]{0}', space=vmem, size = 0x20000, scoped, tag = 'input window, operand 0']
    #allocation4 [shape = 's32[2]{0}', space=sflag, size = 0x8, scoped, tag = 'scoped memory for multi_head_attention.1']
    #allocation5 [shape = 's32[2]{0}', space=sflag, size = 0x8, scoped, tag = 'scoped memory for multi_head_attention.1']
    #allocation6 [shape = 'u8[98304]{0}', space=vmem, size = 0x18000, scoped, tag = 'input window, operand 1, single buffered']
    #allocation7 [shape = 's32[1]{0}', space=sflag, size = 0x4, scoped, tag = 'scoped memory for multi_head_attention.1']
    #allocation8 [shape = 'u8[32768]{0}', space=vmem, size = 0x8000, scoped, tag = 'input window, operand 2, single buffered']
    #allocation9 [shape = 'u8[131072]{0}', space=vmem, size = 0x20000, scoped, tag = 'output window, operand 0']
    %9 = vsyncpa [#allocation4], 0
    %s10 = scalar_lea.sflag [#allocation4], 1
    %11 = vsyncpa %s10, 0
    %12 = vsyncpa [#allocation7], 0
    %13 = vsyncpa [#allocation5], 0
    %s14 = scalar_lea.sflag [#allocation5], 1
    %15 = vsyncpa %s14, 0
    loop: start=0, step=1, limit=4
    $region2: #{multi_head_attention.1} parent=1 // loop_pre_header
      _
    $region3: #{multi_head_attention.1} parent=1 // loop_header
      %s17 = sphi 0, %s21
      %p18 = scmp.ge.s32.totalorder %s17, 4
      %s27 = sphi 0, %s29
      %s30 = sphi 0, %s27
      %s31 = sphi 0, %s30
      %s47 = sphi 0, %s31
      %s51 = sphi 0, %s51
      %s53 = sphi 0, %s51
      %s54 = sphi 0, %s53
      %s68 = sphi 0, %s54
      %s72 = sphi 0, %s72
      %s74 = sphi 0, %s72
      %s75 = sphi 0, %s74
      %s89 = sphi 0, %s75
      %s93 = sphi 0, %s93
      %s95 = sphi 0, %s93
      %s96 = sphi 0, %s95
      %s110 = sphi 0, %s96
      %s116 = sphi 0, %s118
      %s119 = sphi 0, %s116
      %s120 = sphi 0, %s119
      %s136 = sphi 0, %s120
    $region4: #{multi_head_attention.1} parent=1 // loop_header_branch
      %20 = sbr.rel (%p18) target = $region8
    $region5: #{multi_head_attention.1} parent=1 // loop_body
      %s22 = ssub.s32 %s17, 1
      %s23 = ssub.s32 %s17, 2
      %s24 = sadd.s32 %s17, 1
      %s25 = ssub.s32 %s17, %s24
      %p26 = scmp.eq.s32.totalorder %s25, 0
      %s28 = sadd.s32 %s27, 1
      %s29 = scalar_select %p26, %s27, %s28
      %p32 = pneg %p26
      %p33 = scmp.eq.s32.totalorder %s17, 1
      %p34 = por %p32, %p33
      %p35 = scmp.ne.s32.totalorder %s27, %s30
      %p36 = scmp.eq.s32.totalorder %s17, 0
      %p37 = por %p35, %p36
      %p38 = scmp.ne.s32.totalorder %s27, %s30
      %p39 = scmp.eq.s32.totalorder %s22, 1
      %p40 = por %p38, %p39
      %p41 = scmp.ne.s32.totalorder %s30, %s31
      %p42 = scmp.eq.s32.totalorder %s22, 0
      %p43 = por %p41, %p42
      %p44 = scmp.ne.s32.totalorder %s30, %s31
      %p45 = scmp.eq.s32.totalorder %s23, 1
      %p46 = por %p44, %p45
      %p48 = scmp.ne.s32.totalorder %s31, %s47
      %p49 = scmp.eq.s32.totalorder %s23, 0
      %p50 = por %p48, %p49
      %s52 = sadd.s32 %s51, 1
      %p55 = scmp.eq.s32.totalorder %s17, 1
      %p56 = scmp.ne.s32.totalorder %s51, %s53
      %p57 = scmp.eq.s32.totalorder %s17, 0
      %p58 = por %p56, %p57
      %p59 = scmp.ne.s32.totalorder %s51, %s53
      %p60 = scmp.eq.s32.totalorder %s22, 1
      %p61 = por %p59, %p60
      %p62 = scmp.ne.s32.totalorder %s53, %s54
      %p63 = scmp.eq.s32.totalorder %s22, 0
      %p64 = por %p62, %p63
      %p65 = scmp.ne.s32.totalorder %s53, %s54
      %p66 = scmp.eq.s32.totalorder %s23, 1
      %p67 = por %p65, %p66
      %p69 = scmp.ne.s32.totalorder %s54, %s68
      %p70 = scmp.eq.s32.totalorder %s23, 0
      %p71 = por %p69, %p70
      %s73 = sadd.s32 %s72, 1
      %p76 = scmp.eq.s32.totalorder %s17, 1
      %p77 = scmp.ne.s32.totalorder %s72, %s74
      %p78 = scmp.eq.s32.totalorder %s17, 0
      %p79 = por %p77, %p78
      %p80 = scmp.ne.s32.totalorder %s72, %s74
      %p81 = scmp.eq.s32.totalorder %s22, 1
      %p82 = por %p80, %p81
      %p83 = scmp.ne.s32.totalorder %s74, %s75
      %p84 = scmp.eq.s32.totalorder %s22, 0
      %p85 = por %p83, %p84
      %p86 = scmp.ne.s32.totalorder %s74, %s75
      %p87 = scmp.eq.s32.totalorder %s23, 1
      %p88 = por %p86, %p87
      %p90 = scmp.ne.s32.totalorder %s75, %s89
      %p91 = scmp.eq.s32.totalorder %s23, 0
      %p92 = por %p90, %p91
      %s94 = sadd.s32 %s93, 1
      %p97 = scmp.eq.s32.totalorder %s17, 1
      %p98 = scmp.ne.s32.totalorder %s93, %s95
      %p99 = scmp.eq.s32.totalorder %s17, 0
      %p100 = por %p98, %p99
      %p101 = scmp.ne.s32.totalorder %s93, %s95
      %p102 = scmp.eq.s32.totalorder %s22, 1
      %p103 = por %p101, %p102
      %p104 = scmp.ne.s32.totalorder %s95, %s96
      %p105 = scmp.eq.s32.totalorder %s22, 0
      %p106 = por %p104, %p105
      %p107 = scmp.ne.s32.totalorder %s95, %s96
      %p108 = scmp.eq.s32.totalorder %s23, 1
      %p109 = por %p107, %p108
      %p111 = scmp.ne.s32.totalorder %s96, %s110
      %p112 = scmp.eq.s32.totalorder %s23, 0
      %p113 = por %p111, %p112
      %s114 = ssub.s32 %s17, %s24
      %p115 = scmp.eq.s32.totalorder %s114, 0
      %s117 = sadd.s32 %s116, 1
      %s118 = scalar_select %p115, %s116, %s117
      %p121 = pneg %p115
      %p122 = scmp.eq.s32.totalorder %s17, 1
      %p123 = por %p121, %p122
      %p124 = scmp.ne.s32.totalorder %s116, %s119
      %p125 = scmp.eq.s32.totalorder %s17, 0
      %p126 = por %p124, %p125
      %p127 = scmp.ne.s32.totalorder %s116, %s119
      %p128 = scmp.eq.s32.totalorder %s22, 1
      %p129 = por %p127, %p128
      %p130 = scmp.ne.s32.totalorder %s119, %s120
      %p131 = scmp.eq.s32.totalorder %s22, 0
      %p132 = por %p130, %p131
      %p133 = scmp.ne.s32.totalorder %s119, %s120
      %p134 = scmp.eq.s32.totalorder %s23, 1
      %p135 = por %p133, %p134
      %p137 = scmp.ne.s32.totalorder %s120, %s136
      %p138 = scmp.eq.s32.totalorder %s23, 0
      %p139 = por %p137, %p138
      %p140 = scmp.le.s32.totalorder 1, %s17
      %p141 = scmp.lt.s32.totalorder %s17, 3
      %p142 = pnand %p140, %p141
      %p143 = pneg %p142
      // Predicated region
      $region9: #{multi_head_attention.1} parent=5 // pred_check
        _
      $region10: #{multi_head_attention.1} parent=5 // pred_check_branch
        %145 = sbr.rel (%p142) target = $region12
      $region11: #{multi_head_attention.1} parent=5 // pred_region
        %s146 = ssub.s32 %s17, 1
        // Predicated region
        $region13: #{multi_head_attention.1} parent=11 // pred_check
          %p147 = pneg %p64
        $region14: #{multi_head_attention.1} parent=11 // pred_check_branch
          %149 = sbr.rel (%p147) target = $region16
        $region15: #{multi_head_attention.1} parent=11 // pred_region
          %151 = vsyncadd [#allocation7], 0
          %s152 = sshll.u32 %s1, 4
          %s153 = int_to_ptr.hbm [resolvable:$true] %s152
          %s154 = sshll.u32 [#allocation6], 4
          %s155 = int_to_ptr.vmem [resolvable:$true] %s154
          %160 = dma.hbm_to_vmem [thread:$0]  %s153, 3072, %s155, [#allocation7], 192, 192, 12
        $region16: #{multi_head_attention.1} parent=11 // pred_fallthru
          _
        // Predicated region
        $region17: #{multi_head_attention.1} parent=11 // pred_check
          %p161 = pneg %p85
        $region18: #{multi_head_attention.1} parent=11 // pred_check_branch
          %163 = sbr.rel (%p161) target = $region20
        $region19: #{multi_head_attention.1} parent=11 // pred_region
          %165 = vsyncadd [#allocation7], 0
          %s166 = sshll.u32 %s2, 4
          %s167 = int_to_ptr.hbm [resolvable:$true] %s166
          %s168 = sshll.u32 [#allocation8], 4
          %s169 = int_to_ptr.vmem [resolvable:$true] %s168
          %174 = dma.hbm_to_vmem [thread:$0]  %s167, 1024, %s169, [#allocation7], 64, 64, 4
        $region20: #{multi_head_attention.1} parent=11 // pred_fallthru
          _
        // Predicated region
        $region21: #{multi_head_attention.1} parent=11 // pred_check
          %p175 = pneg %p106
        $region22: #{multi_head_attention.1} parent=11 // pred_check_branch
          %177 = sbr.rel (%p175) target = $region24
        $region23: #{multi_head_attention.1} parent=11 // pred_region
          _
        $region24: #{multi_head_attention.1} parent=11 // pred_fallthru
          _
      $region12: #{multi_head_attention.1} parent=5 // pred_fallthru
        _
      %p178 = scmp.lt.s32.totalorder %s17, 2
      // Predicated region
      $region25: #{multi_head_attention.1} parent=5 // pred_check
        %p179 = pneg %p178
      $region26: #{multi_head_attention.1} parent=5 // pred_check_branch
        %181 = sbr.rel (%p179) target = $region28
      $region27: #{multi_head_attention.1} parent=5 // pred_region
        // Predicated region
        $region29: #{multi_head_attention.1} parent=27 // pred_check
          %p182 = pneg %p37
        $region30: #{multi_head_attention.1} parent=27 // pred_check_branch
          %184 = sbr.rel (%p182) target = $region32
        $region31: #{multi_head_attention.1} parent=27 // pred_region
          %s185 = sand.u32 %s27, 1
          %s186 = scalar_lea.sflag [#allocation4], %s185
          %s187 = sand.u32 %s27, 1
          %s188 = smul.addr %s187, 128
          %s189 = scalar_lea.vmem [#allocation3], %s188
          %191 = vsyncadd %s186, 0
          %s192 = smul.addr %s17, 16
          %s193 = smul.addr %s192, 8
          %s194 = scalar_lea.hbm %s0, %s193
          %s195 = sshll.u32 %s194, 4
          %s196 = int_to_ptr.hbm [resolvable:$true] %s195
          %s197 = sshll.u32 %s189, 4
          %s198 = int_to_ptr.vmem [resolvable:$true] %s197
          %203 = dma.hbm_to_vmem [thread:$0]  %s196, 2048, %s198, %s186, 128, 128, 8
        $region32: #{multi_head_attention.1} parent=27 // pred_fallthru
          _
      $region28: #{multi_head_attention.1} parent=5 // pred_fallthru
        _
      %p204 = scmp.le.s32.totalorder 1, %s17
      %p205 = scmp.lt.s32.totalorder %s17, 3
      %p206 = pnand %p204, %p205
      %p207 = pneg %p206
      // Predicated region
      $region33: #{multi_head_attention.1} parent=5 // pred_check
        _
      $region34: #{multi_head_attention.1} parent=5 // pred_check_branch
        %209 = sbr.rel (%p206) target = $region36
      $region35: #{multi_head_attention.1} parent=5 // pred_region
        %s210 = ssub.s32 %s17, 1
        %s211 = sand.u32 %s30, 1
        %s212 = scalar_lea.sflag [#allocation4], %s211
        %s213 = sand.u32 %s30, 1
        %s214 = smul.addr %s213, 128
        %s215 = scalar_lea.vmem [#allocation3], %s214
        // Predicated region
        $region37: #{multi_head_attention.1} parent=35 // pred_check
          %p216 = pneg %p43
        $region38: #{multi_head_attention.1} parent=35 // pred_check_branch
          %218 = sbr.rel (%p216) target = $region40
        $region39: #{multi_head_attention.1} parent=35 // pred_region
          %220 = dma.done %s212, 2048
        $region40: #{multi_head_attention.1} parent=35 // pred_fallthru
          _
        // Predicated region
        $region41: #{multi_head_attention.1} parent=35 // pred_check
          %p221 = pneg %p64
        $region42: #{multi_head_attention.1} parent=35 // pred_check_branch
          %223 = sbr.rel (%p221) target = $region44
        $region43: #{multi_head_attention.1} parent=35 // pred_region
          %225 = dma.done [#allocation7], 3072
        $region44: #{multi_head_attention.1} parent=35 // pred_fallthru
          _
        // Predicated region
        $region45: #{multi_head_attention.1} parent=35 // pred_check
          %p226 = pneg %p85
        $region46: #{multi_head_attention.1} parent=35 // pred_check_branch
          %228 = sbr.rel (%p226) target = $region48
        $region47: #{multi_head_attention.1} parent=35 // pred_region
          %230 = dma.done [#allocation7], 1024
        $region48: #{multi_head_attention.1} parent=35 // pred_fallthru
          _
        %s231 = sand.u32 %s30, 1
        %s232 = scalar_lea.sflag [#allocation4], %s231
        %s233 = sand.u32 %s30, 1
        %s234 = smul.addr %s233, 128
        %s235 = scalar_lea.vmem [#allocation3], %s234
        %p236 = pneg %p43
        %p237 = pneg %p40
        %p238 = pneg %p64
        %p239 = pneg %p61
        %p240 = pneg %p85
        %p241 = pneg %p82
        %p242 = pneg %p106
        %p243 = pneg %p103
        %p244 = pneg %p132
        %p245 = pneg %p129
        %s246 = sand.u32 %s119, 1
        %s247 = scalar_lea.sflag [#allocation5], %s246
        %s248 = sand.u32 %s119, 1
        %s249 = smul.addr %s248, 128
        %s250 = scalar_lea.vmem [#allocation9], %s249
        %v251 = vld [vmem:[%s215] sm:$0xff]
        %v252 = vld [vmem:[%s215 + $0x8] sm:$0xff]
        %v253 = vld [vmem:[%s215 + $0x10] sm:$0xff]
        %v254 = vld [vmem:[%s215 + $0x18] sm:$0xff]
        %v255 = vld [vmem:[%s215 + $0x20] sm:$0xff]
        %v256 = vld [vmem:[%s215 + $0x28] sm:$0xff]
        %v257 = vld [vmem:[%s215 + $0x30] sm:$0xff]
        %v258 = vld [vmem:[%s215 + $0x38] sm:$0xff]
        %v259 = vld [vmem:[%s215 + $0x40] sm:$0xff]
        %v260 = vld [vmem:[%s215 + $0x48] sm:$0xff]
        %v261 = vld [vmem:[%s215 + $0x50] sm:$0xff]
        %v262 = vld [vmem:[%s215 + $0x58] sm:$0xff]
        %v263 = vld [vmem:[%s215 + $0x60] sm:$0xff]
        %v264 = vld [vmem:[%s215 + $0x68] sm:$0xff]
        %v265 = vld [vmem:[%s215 + $0x70] sm:$0xff]
        %v266 = vld [vmem:[%s215 + $0x78] sm:$0xff]
        %v267 = vpack.c.bf16 %v252, %v251
        %v268 = vpack.c.bf16 %v254, %v253
        %v269 = vpack.c.bf16 %v256, %v255
        %v270 = vpack.c.bf16 %v258, %v257
        %v271 = vpack.c.bf16 %v260, %v259
        %v272 = vpack.c.bf16 %v262, %v261
        %v273 = vpack.c.bf16 %v264, %v263
        %v274 = vpack.c.bf16 %v266, %v265
        %v275 = vld [vmem:[#allocation6] sm:$0xff]
        %v276 = vld [vmem:[#allocation6 + $0x8] sm:$0xf]
        %v277 = vld [vmem:[#allocation6 + $0xc] sm:$0xff]
        %v278 = vld [vmem:[#allocation6 + $0x14] sm:$0xf]
        %v279 = vld [vmem:[#allocation6 + $0x18] sm:$0xff]
        %v280 = vld [vmem:[#allocation6 + $0x20] sm:$0xf]
        %v281 = vld [vmem:[#allocation6 + $0x24] sm:$0xff]
        %v282 = vld [vmem:[#allocation6 + $0x2c] sm:$0xf]
        %v283 = vld [vmem:[#allocation6 + $0x30] sm:$0xff]
        %v284 = vld [vmem:[#allocation6 + $0x38] sm:$0xf]
        %v285 = vld [vmem:[#allocation6 + $0x3c] sm:$0xff]
        %v286 = vld [vmem:[#allocation6 + $0x44] sm:$0xf]
        %v287 = vld [vmem:[#allocation6 + $0x48] sm:$0xff]
        %v288 = vld [vmem:[#allocation6 + $0x50] sm:$0xf]
        %v289 = vld [vmem:[#allocation6 + $0x54] sm:$0xff]
        %v290 = vld [vmem:[#allocation6 + $0x5c] sm:$0xf]
        %v291 = vld [vmem:[#allocation6 + $0x60] sm:$0xff]
        %v292 = vld [vmem:[#allocation6 + $0x68] sm:$0xf]
        %v293 = vld [vmem:[#allocation6 + $0x6c] sm:$0xff]
        %v294 = vld [vmem:[#allocation6 + $0x74] sm:$0xf]
        %v295 = vld [vmem:[#allocation6 + $0x78] sm:$0xff]
        %v296 = vld [vmem:[#allocation6 + $0x80] sm:$0xf]
        %v297 = vld [vmem:[#allocation6 + $0x84] sm:$0xff]
        %v298 = vld [vmem:[#allocation6 + $0x8c] sm:$0xf]
        %v299 = vld [vmem:[#allocation6 + $0x90] sm:$0xff]
        %v300 = vld [vmem:[#allocation6 + $0x98] sm:$0xf]
        %v301 = vld [vmem:[#allocation6 + $0x9c] sm:$0xff]
        %v302 = vld [vmem:[#allocation6 + $0xa4] sm:$0xf]
        %v303 = vld [vmem:[#allocation6 + $0xa8] sm:$0xff]
        %v304 = vld [vmem:[#allocation6 + $0xb0] sm:$0xf]
        %v305 = vld [vmem:[#allocation6 + $0xb4] sm:$0xff]
        %v306 = vld [vmem:[#allocation6 + $0xbc] sm:$0xf]
        %v339 = vunpack.c.l.b16 %v275
        %v340 = vunpack.c.h.b16 %v275
        %v341 = vunpack.c.l.b16 %v276
        %v342 = vunpack.c.l.b16 %v277
        %v343 = vunpack.c.h.b16 %v277
        %v344 = vunpack.c.l.b16 %v278
        %v345 = vunpack.c.l.b16 %v279
        %v346 = vunpack.c.h.b16 %v279
        %v347 = vunpack.c.l.b16 %v280
        %v348 = vunpack.c.l.b16 %v281
        %v349 = vunpack.c.h.b16 %v281
        %v350 = vunpack.c.l.b16 %v282
        %v351 = vunpack.c.l.b16 %v283
        %v352 = vunpack.c.h.b16 %v283
        %v353 = vunpack.c.l.b16 %v284
        %v354 = vunpack.c.l.b16 %v285
        %v355 = vunpack.c.h.b16 %v285
        %v356 = vunpack.c.l.b16 %v286
        %v357 = vunpack.c.l.b16 %v287
        %v358 = vunpack.c.h.b16 %v287
        %v359 = vunpack.c.l.b16 %v288
        %v360 = vunpack.c.l.b16 %v289
        %v361 = vunpack.c.h.b16 %v289
        %v362 = vunpack.c.l.b16 %v290
        %v363 = vunpack.c.l.b16 %v291
        %v364 = vunpack.c.h.b16 %v291
        %v365 = vunpack.c.l.b16 %v292
        %v366 = vunpack.c.l.b16 %v293
        %v367 = vunpack.c.h.b16 %v293
        %v368 = vunpack.c.l.b16 %v294
        %v369 = vunpack.c.l.b16 %v295
        %v370 = vunpack.c.h.b16 %v295
        %v371 = vunpack.c.l.b16 %v296
        %v372 = vunpack.c.l.b16 %v297
        %v373 = vunpack.c.h.b16 %v297
        %v374 = vunpack.c.l.b16 %v298
        %v375 = vunpack.c.l.b16 %v299
        %v376 = vunpack.c.h.b16 %v299
        %v377 = vunpack.c.l.b16 %v300
        %v378 = vunpack.c.l.b16 %v301
        %v379 = vunpack.c.h.b16 %v301
        %v380 = vunpack.c.l.b16 %v302
        %v381 = vunpack.c.l.b16 %v303
        %v382 = vunpack.c.h.b16 %v303
        %v383 = vunpack.c.l.b16 %v304
        %v384 = vunpack.c.l.b16 %v305
        %v385 = vunpack.c.h.b16 %v305
        %v386 = vunpack.c.l.b16 %v306
        %v387 = vpack.c.b16 %v342, %v339
        %v388 = vpack.c.b16 %v343, %v340
        %v389 = vpack.c.b16 %v344, %v341
        %v390 = vpack.c.b16 %v348, %v345
        %v391 = vpack.c.b16 %v349, %v346
        %v392 = vpack.c.b16 %v350, %v347
        %v393 = vpack.c.b16 %v354, %v351
        %v394 = vpack.c.b16 %v355, %v352
        %v395 = vpack.c.b16 %v356, %v353
        %v396 = vpack.c.b16 %v360, %v357
        %v397 = vpack.c.b16 %v361, %v358
        %v398 = vpack.c.b16 %v362, %v359
        %v399 = vpack.c.b16 %v366, %v363
        %v400 = vpack.c.b16 %v367, %v364
        %v401 = vpack.c.b16 %v368, %v365
        %v402 = vpack.c.b16 %v372, %v369
        %v403 = vpack.c.b16 %v373, %v370
        %v404 = vpack.c.b16 %v374, %v371
        %v405 = vpack.c.b16 %v378, %v375
        %v406 = vpack.c.b16 %v379, %v376
        %v407 = vpack.c.b16 %v380, %v377
        %v408 = vpack.c.b16 %v384, %v381
        %v409 = vpack.c.b16 %v385, %v382
        %v410 = vpack.c.b16 %v386, %v383
        %435 = vmatpush.bf16.msra.mxu0 %v408
        %436 = vmatpush.bf16.msra.mxu0 %v405
        %437 = vmatpush.bf16.msra.mxu0 %v402
        %438 = vmatpush.bf16.msra.mxu0 %v399
        %439 = vmatpush.bf16.msra.mxu0 %v396
        %440 = vmatpush.bf16.msra.mxu0 %v393
        %441 = vmatpush.bf16.msra.mxu0 %v390
        %442 = vmatpush.bf16.msra.mxu0 %v387
        %443 = vmatmul.bf16.gmra.mxu0 %v267
        %v444 = vpop.f32.mrf.mxu0
        %v445 = vadd.f32 0.0, %v444
        %v446 = vpop.f32.mrf.mxu0
        %v447 = vadd.f32 0.0, %v446
        %448 = vmatmul.bf16.gmra.mxu0 %v268
        %v449 = vpop.f32.mrf.mxu0
        %v450 = vadd.f32 0.0, %v449
        %v451 = vpop.f32.mrf.mxu0
        %v452 = vadd.f32 0.0, %v451
        %453 = vmatmul.bf16.gmra.mxu0 %v269
        %v454 = vpop.f32.mrf.mxu0
        %v455 = vadd.f32 0.0, %v454
        %v456 = vpop.f32.mrf.mxu0
        %v457 = vadd.f32 0.0, %v456
        %458 = vmatmul.bf16.gmra.mxu0 %v270
        %v459 = vpop.f32.mrf.mxu0
        %v460 = vadd.f32 0.0, %v459
        %v461 = vpop.f32.mrf.mxu0
        %v462 = vadd.f32 0.0, %v461
        %463 = vmatmul.bf16.gmra.mxu0 %v271
        %v464 = vpop.f32.mrf.mxu0
        %v465 = vadd.f32 0.0, %v464
        %v466 = vpop.f32.mrf.mxu0
        %v467 = vadd.f32 0.0, %v466
        %468 = vmatmul.bf16.gmra.mxu0 %v272
        %v469 = vpop.f32.mrf.mxu0
        %v470 = vadd.f32 0.0, %v469
        %v471 = vpop.f32.mrf.mxu0
        %v472 = vadd.f32 0.0, %v471
        %473 = vmatmul.bf16.gmra.mxu0 %v273
        %v474 = vpop.f32.mrf.mxu0
        %v475 = vadd.f32 0.0, %v474
        %v476 = vpop.f32.mrf.mxu0
        %v477 = vadd.f32 0.0, %v476
        %478 = vmatmul.bf16.gmra.mxu0 %v274
        %v479 = vpop.f32.mrf.mxu0
        %v480 = vadd.f32 0.0, %v479
        %v481 = vpop.f32.mrf.mxu0
        %v482 = vadd.f32 0.0, %v481
        %483 = vdwg.mxu0
        %484 = vmatpush.bf16.msra.mxu0 %v409
        %485 = vmatpush.bf16.msra.mxu0 %v406
        %486 = vmatpush.bf16.msra.mxu0 %v403
        %487 = vmatpush.bf16.msra.mxu0 %v400
        %488 = vmatpush.bf16.msra.mxu0 %v397
        %489 = vmatpush.bf16.msra.mxu0 %v394
        %490 = vmatpush.bf16.msra.mxu0 %v391
        %491 = vmatpush.bf16.msra.mxu0 %v388
        %492 = vmatmul.bf16.gmra.mxu0 %v267
        %v493 = vpop.f32.mrf.mxu0
        %v494 = vadd.f32 0.0, %v493
        %v495 = vpop.f32.mrf.mxu0
        %v496 = vadd.f32 0.0, %v495
        %497 = vmatmul.bf16.gmra.mxu0 %v268
        %v498 = vpop.f32.mrf.mxu0
        %v499 = vadd.f32 0.0, %v498
        %v500 = vpop.f32.mrf.mxu0
        %v501 = vadd.f32 0.0, %v500
        %502 = vmatmul.bf16.gmra.mxu0 %v269
        %v503 = vpop.f32.mrf.mxu0
        %v504 = vadd.f32 0.0, %v503
        %v505 = vpop.f32.mrf.mxu0
        %v506 = vadd.f32 0.0, %v505
        %507 = vmatmul.bf16.gmra.mxu0 %v270
        %v508 = vpop.f32.mrf.mxu0
        %v509 = vadd.f32 0.0, %v508
        %v510 = vpop.f32.mrf.mxu0
        %v511 = vadd.f32 0.0, %v510
        %512 = vmatmul.bf16.gmra.mxu0 %v271
        %v513 = vpop.f32.mrf.mxu0
        %v514 = vadd.f32 0.0, %v513
        %v515 = vpop.f32.mrf.mxu0
        %v516 = vadd.f32 0.0, %v515
        %517 = vmatmul.bf16.gmra.mxu0 %v272
        %v518 = vpop.f32.mrf.mxu0
        %v519 = vadd.f32 0.0, %v518
        %v520 = vpop.f32.mrf.mxu0
        %v521 = vadd.f32 0.0, %v520
        %522 = vmatmul.bf16.gmra.mxu0 %v273
        %v523 = vpop.f32.mrf.mxu0
        %v524 = vadd.f32 0.0, %v523
        %v525 = vpop.f32.mrf.mxu0
        %v526 = vadd.f32 0.0, %v525
        %527 = vmatmul.bf16.gmra.mxu0 %v274
        %v528 = vpop.f32.mrf.mxu0
        %v529 = vadd.f32 0.0, %v528
        %v530 = vpop.f32.mrf.mxu0
        %v531 = vadd.f32 0.0, %v530
        %532 = vdwg.mxu0
        %533 = vmatpush.bf16.msra.mxu0 %v410
        %534 = vmatpush.bf16.msra.mxu0 %v407
        %535 = vmatpush.bf16.msra.mxu0 %v404
        %536 = vmatpush.bf16.msra.mxu0 %v401
        %537 = vmatpush.bf16.msra.mxu0 %v398
        %538 = vmatpush.bf16.msra.mxu0 %v395
        %539 = vmatpush.bf16.msra.mxu0 %v392
        %540 = vmatpush.bf16.msra.mxu0 %v389
        %541 = vmatmul.bf16.gmra.mxu0 %v267
        %v542 = vpop.f32.mrf.mxu0
        %v543 = vadd.f32 0.0, %v542
        %v544 = vpop.f32.mrf.mxu0
        %v545 = vadd.f32 0.0, %v544
        %546 = vmatmul.bf16.gmra.mxu0 %v268
        %v547 = vpop.f32.mrf.mxu0
        %v548 = vadd.f32 0.0, %v547
        %v549 = vpop.f32.mrf.mxu0
        %v550 = vadd.f32 0.0, %v549
        %551 = vmatmul.bf16.gmra.mxu0 %v269
        %v552 = vpop.f32.mrf.mxu0
        %v553 = vadd.f32 0.0, %v552
        %v554 = vpop.f32.mrf.mxu0
        %v555 = vadd.f32 0.0, %v554
        %556 = vmatmul.bf16.gmra.mxu0 %v270
        %v557 = vpop.f32.mrf.mxu0
        %v558 = vadd.f32 0.0, %v557
        %v559 = vpop.f32.mrf.mxu0
        %v560 = vadd.f32 0.0, %v559
        %561 = vmatmul.bf16.gmra.mxu0 %v271
        %v562 = vpop.f32.mrf.mxu0
        %v563 = vadd.f32 0.0, %v562
        %v564 = vpop.f32.mrf.mxu0
        %v565 = vadd.f32 0.0, %v564
        %566 = vmatmul.bf16.gmra.mxu0 %v272
        %v567 = vpop.f32.mrf.mxu0
        %v568 = vadd.f32 0.0, %v567
        %v569 = vpop.f32.mrf.mxu0
        %v570 = vadd.f32 0.0, %v569
        %571 = vmatmul.bf16.gmra.mxu0 %v273
        %v572 = vpop.f32.mrf.mxu0
        %v573 = vadd.f32 0.0, %v572
        %v574 = vpop.f32.mrf.mxu0
        %v575 = vadd.f32 0.0, %v574
        %576 = vmatmul.bf16.gmra.mxu0 %v274
        %v577 = vpop.f32.mrf.mxu0
        %v578 = vadd.f32 0.0, %v577
        %v579 = vpop.f32.mrf.mxu0
        %v580 = vadd.f32 0.0, %v579
        %581 = vdwg.mxu0
        %v582 = vpack.c.bf16 %v445, %v445
        %v583 = vpack.c.bf16 %v447, %v447
        %v584 = vpack.c.bf16 %v450, %v450
        %v585 = vpack.c.bf16 %v452, %v452
        %v586 = vpack.c.bf16 %v455, %v455
        %v587 = vpack.c.bf16 %v457, %v457
        %v588 = vpack.c.bf16 %v460, %v460
        %v589 = vpack.c.bf16 %v462, %v462
        %v590 = vpack.c.bf16 %v465, %v465
        %v591 = vpack.c.bf16 %v467, %v467
        %v592 = vpack.c.bf16 %v470, %v470
        %v593 = vpack.c.bf16 %v472, %v472
        %v594 = vpack.c.bf16 %v475, %v475
        %v595 = vpack.c.bf16 %v477, %v477
        %v596 = vpack.c.bf16 %v480, %v480
        %v597 = vpack.c.bf16 %v482, %v482
        %v598 = vpack.c.bf16 %v494, %v494
        %v599 = vpack.c.bf16 %v496, %v496
        %v600 = vpack.c.bf16 %v499, %v499
        %v601 = vpack.c.bf16 %v501, %v501
        %v602 = vpack.c.bf16 %v504, %v504
        %v603 = vpack.c.bf16 %v506, %v506
        %v604 = vpack.c.bf16 %v509, %v509
        %v605 = vpack.c.bf16 %v511, %v511
        %v606 = vpack.c.bf16 %v514, %v514
        %v607 = vpack.c.bf16 %v516, %v516
        %v608 = vpack.c.bf16 %v519, %v519
        %v609 = vpack.c.bf16 %v521, %v521
        %v610 = vpack.c.bf16 %v524, %v524
        %v611 = vpack.c.bf16 %v526, %v526
        %v612 = vpack.c.bf16 %v529, %v529
        %v613 = vpack.c.bf16 %v531, %v531
        %v614 = vpack.c.bf16 %v543, %v543
        %v615 = vpack.c.bf16 %v545, %v545
        %v616 = vpack.c.bf16 %v548, %v548
        %v617 = vpack.c.bf16 %v550, %v550
        %v618 = vpack.c.bf16 %v553, %v553
        %v619 = vpack.c.bf16 %v555, %v555
        %v620 = vpack.c.bf16 %v558, %v558
        %v621 = vpack.c.bf16 %v560, %v560
        %v622 = vpack.c.bf16 %v563, %v563
        %v623 = vpack.c.bf16 %v565, %v565
        %v624 = vpack.c.bf16 %v568, %v568
        %v625 = vpack.c.bf16 %v570, %v570
        %v626 = vpack.c.bf16 %v573, %v573
        %v627 = vpack.c.bf16 %v575, %v575
        %v628 = vpack.c.bf16 %v578, %v578
        %v629 = vpack.c.bf16 %v580, %v580
        %v630 = vlaneseq
        %v631 = vshrl.u32 %v630, 7
        %v632 = vadd.s32 %v631, 8
        %v633 = vadd.s32 %v631, 16
        %v634 = vadd.s32 %v631, 24
        %v635 = vadd.s32 %v631, 32
        %v636 = vadd.s32 %v631, 40
        %v637 = vadd.s32 %v631, 48
        %v638 = vadd.s32 %v631, 56
        %v639 = vadd.s32 %v631, 64
        %v640 = vadd.s32 %v631, 72
        %v641 = vadd.s32 %v631, 80
        %v642 = vadd.s32 %v631, 88
        %v643 = vadd.s32 %v631, 96
        %v644 = vadd.s32 %v631, 104
        %v645 = vadd.s32 %v631, 112
        %v646 = vadd.s32 %v631, 120
        %v647 = vlaneseq
        %v648 = vand.u32 %v647, 127
        %vm649 = vcmp.ge.s32.totalorder %v631, %v648
        %vm650 = vcmp.ge.s32.totalorder %v632, %v648
        %vm651 = vcmp.ge.s32.totalorder %v633, %v648
        %vm652 = vcmp.ge.s32.totalorder %v634, %v648
        %vm653 = vcmp.ge.s32.totalorder %v635, %v648
        %vm654 = vcmp.ge.s32.totalorder %v636, %v648
        %vm655 = vcmp.ge.s32.totalorder %v637, %v648
        %vm656 = vcmp.ge.s32.totalorder %v638, %v648
        %vm657 = vcmp.ge.s32.totalorder %v639, %v648
        %vm658 = vcmp.ge.s32.totalorder %v640, %v648
        %vm659 = vcmp.ge.s32.totalorder %v641, %v648
        %vm660 = vcmp.ge.s32.totalorder %v642, %v648
        %vm661 = vcmp.ge.s32.totalorder %v643, %v648
        %vm662 = vcmp.ge.s32.totalorder %v644, %v648
        %vm663 = vcmp.ge.s32.totalorder %v645, %v648
        %vm664 = vcmp.ge.s32.totalorder %v646, %v648
        %v681 = vunpack.c.l.b16 %v582
        %v682 = vunpack.c.l.b16 %v583
        %v683 = vunpack.c.l.b16 %v584
        %v684 = vunpack.c.l.b16 %v585
        %v685 = vunpack.c.l.b16 %v586
        %v686 = vunpack.c.l.b16 %v587
        %v687 = vunpack.c.l.b16 %v588
        %v688 = vunpack.c.l.b16 %v589
        %v689 = vunpack.c.l.b16 %v590
        %v690 = vunpack.c.l.b16 %v591
        %v691 = vunpack.c.l.b16 %v592
        %v692 = vunpack.c.l.b16 %v593
        %v693 = vunpack.c.l.b16 %v594
        %v694 = vunpack.c.l.b16 %v595
        %v695 = vunpack.c.l.b16 %v596
        %v696 = vunpack.c.l.b16 %v597
        %v697 = vpack.c.b16 %v682, %v681
        %v698 = vpack.c.b16 %v684, %v683
        %v699 = vpack.c.b16 %v686, %v685
        %v700 = vpack.c.b16 %v688, %v687
        %v701 = vpack.c.b16 %v690, %v689
        %v702 = vpack.c.b16 %v692, %v691
        %v703 = vpack.c.b16 %v694, %v693
        %v704 = vpack.c.b16 %v696, %v695
        %v721 = vunpack.c.l.b16 %v598
        %v722 = vunpack.c.l.b16 %v599
        %v723 = vunpack.c.l.b16 %v600
        %v724 = vunpack.c.l.b16 %v601
        %v725 = vunpack.c.l.b16 %v602
        %v726 = vunpack.c.l.b16 %v603
        %v727 = vunpack.c.l.b16 %v604
        %v728 = vunpack.c.l.b16 %v605
        %v729 = vunpack.c.l.b16 %v606
        %v730 = vunpack.c.l.b16 %v607
        %v731 = vunpack.c.l.b16 %v608
        %v732 = vunpack.c.l.b16 %v609
        %v733 = vunpack.c.l.b16 %v610
        %v734 = vunpack.c.l.b16 %v611
        %v735 = vunpack.c.l.b16 %v612
        %v736 = vunpack.c.l.b16 %v613
        %v737 = vpack.c.b16 %v722, %v721
        %v738 = vpack.c.b16 %v724, %v723
        %v739 = vpack.c.b16 %v726, %v725
        %v740 = vpack.c.b16 %v728, %v727
        %v741 = vpack.c.b16 %v730, %v729
        %v742 = vpack.c.b16 %v732, %v731
        %v743 = vpack.c.b16 %v734, %v733
        %v744 = vpack.c.b16 %v736, %v735
        %vm745 = vcmask 261120
        %v747 = vsel %vm745, %v697, 0
        %v750 = vsel %vm745, %v698, 0
        %v753 = vsel %vm745, %v699, 0
        %v756 = vsel %vm745, %v700, 0
        %v759 = vsel %vm745, %v701, 0
        %v762 = vsel %vm745, %v702, 0
        %v765 = vsel %vm745, %v703, 0
        %v768 = vsel %vm745, %v704, 0
        %v771 = vsel %vm745, %v737, 0
        %v774 = vsel %vm745, %v738, 0
        %v777 = vsel %vm745, %v739, 0
        %v780 = vsel %vm745, %v740, 0
        %v783 = vsel %vm745, %v741, 0
        %v786 = vsel %vm745, %v742, 0
        %v789 = vsel %vm745, %v743, 0
        %v792 = vsel %vm745, %v744, 0
        %794 = vmatpush.bf16.xpose.msra.mxu0 %v792
        %795 = vmatpush.bf16.xpose.msra.mxu0 %v789
        %796 = vmatpush.bf16.xpose.msra.mxu0 %v786
        %797 = vmatpush.bf16.xpose.msra.mxu0 %v783
        %798 = vmatpush.bf16.xpose.msra.mxu0 %v780
        %799 = vmatpush.bf16.xpose.msra.mxu0 %v777
        %800 = vmatpush.bf16.xpose.msra.mxu0 %v774
        %801 = vmatpush.bf16.xpose.msra.mxu0 %v771
        %802 = vmatmul.bf16.gmra.mxu0 %v747
        %v803 = vpop.f32.mrf.mxu0
        %v804 = vadd.f32 0.0, %v803
        %v805 = vpop.f32.mrf.mxu0
        %v806 = vadd.f32 0.0, %v805
        %807 = vmatmul.bf16.gmra.mxu0 %v750
        %v808 = vpop.f32.mrf.mxu0
        %v809 = vadd.f32 0.0, %v808
        %v810 = vpop.f32.mrf.mxu0
        %v811 = vadd.f32 0.0, %v810
        %812 = vmatmul.bf16.gmra.mxu0 %v753
        %v813 = vpop.f32.mrf.mxu0
        %v814 = vadd.f32 0.0, %v813
        %v815 = vpop.f32.mrf.mxu0
        %v816 = vadd.f32 0.0, %v815
        %817 = vmatmul.bf16.gmra.mxu0 %v756
        %v818 = vpop.f32.mrf.mxu0
        %v819 = vadd.f32 0.0, %v818
        %v820 = vpop.f32.mrf.mxu0
        %v821 = vadd.f32 0.0, %v820
        %822 = vmatmul.bf16.gmra.mxu0 %v759
        %v823 = vpop.f32.mrf.mxu0
        %v824 = vadd.f32 0.0, %v823
        %v825 = vpop.f32.mrf.mxu0
        %v826 = vadd.f32 0.0, %v825
        %827 = vmatmul.bf16.gmra.mxu0 %v762
        %v828 = vpop.f32.mrf.mxu0
        %v829 = vadd.f32 0.0, %v828
        %v830 = vpop.f32.mrf.mxu0
        %v831 = vadd.f32 0.0, %v830
        %832 = vmatmul.bf16.gmra.mxu0 %v765
        %v833 = vpop.f32.mrf.mxu0
        %v834 = vadd.f32 0.0, %v833
        %v835 = vpop.f32.mrf.mxu0
        %v836 = vadd.f32 0.0, %v835
        %837 = vmatmul.bf16.gmra.mxu0 %v768
        %v838 = vpop.f32.mrf.mxu0
        %v839 = vadd.f32 0.0, %v838
        %v840 = vpop.f32.mrf.mxu0
        %v841 = vadd.f32 0.0, %v840
        %842 = vdwg.mxu0
        %v843 = vsel %vm649, %v804, -1e+30
        %v844 = vsel %vm650, %v806, -1e+30
        %v845 = vsel %vm651, %v809, -1e+30
        %v846 = vsel %vm652, %v811, -1e+30
        %v847 = vsel %vm653, %v814, -1e+30
        %v848 = vsel %vm654, %v816, -1e+30
        %v849 = vsel %vm655, %v819, -1e+30
        %v850 = vsel %vm656, %v821, -1e+30
        %v851 = vsel %vm657, %v824, -1e+30
        %v852 = vsel %vm658, %v826, -1e+30
        %v853 = vsel %vm659, %v829, -1e+30
        %v854 = vsel %vm660, %v831, -1e+30
        %v855 = vsel %vm661, %v834, -1e+30
        %v856 = vsel %vm662, %v836, -1e+30
        %v857 = vsel %vm663, %v839, -1e+30
        %v858 = vsel %vm664, %v841, -1e+30
        %859 = vmax.xlane.f32.xlu0 %v843
        %v860 = vpop.xlane.xlu0 %859
        %861 = vmax.xlane.f32.xlu0 %v844
        %v862 = vpop.xlane.xlu0 %861
        %863 = vmax.xlane.f32.xlu0 %v845
        %v864 = vpop.xlane.xlu0 %863
        %865 = vmax.xlane.f32.xlu0 %v846
        %v866 = vpop.xlane.xlu0 %865
        %867 = vmax.xlane.f32.xlu0 %v847
        %v868 = vpop.xlane.xlu0 %867
        %869 = vmax.xlane.f32.xlu0 %v848
        %v870 = vpop.xlane.xlu0 %869
        %871 = vmax.xlane.f32.xlu0 %v849
        %v872 = vpop.xlane.xlu0 %871
        %873 = vmax.xlane.f32.xlu0 %v850
        %v874 = vpop.xlane.xlu0 %873
        %875 = vmax.xlane.f32.xlu0 %v851
        %v876 = vpop.xlane.xlu0 %875
        %877 = vmax.xlane.f32.xlu0 %v852
        %v878 = vpop.xlane.xlu0 %877
        %879 = vmax.xlane.f32.xlu0 %v853
        %v880 = vpop.xlane.xlu0 %879
        %881 = vmax.xlane.f32.xlu0 %v854
        %v882 = vpop.xlane.xlu0 %881
        %883 = vmax.xlane.f32.xlu0 %v855
        %v884 = vpop.xlane.xlu0 %883
        %885 = vmax.xlane.f32.xlu0 %v856
        %v886 = vpop.xlane.xlu0 %885
        %887 = vmax.xlane.f32.xlu0 %v857
        %v888 = vpop.xlane.xlu0 %887
        %889 = vmax.xlane.f32.xlu0 %v858
        %v890 = vpop.xlane.xlu0 %889
        %v891 = vsub.f32 %v843, %v860
        %v892 = vsub.f32 %v844, %v862
        %v893 = vsub.f32 %v845, %v864
        %v894 = vsub.f32 %v846, %v866
        %v895 = vsub.f32 %v847, %v868
        %v896 = vsub.f32 %v848, %v870
        %v897 = vsub.f32 %v849, %v872
        %v898 = vsub.f32 %v850, %v874
        %v899 = vsub.f32 %v851, %v876
        %v900 = vsub.f32 %v852, %v878
        %v901 = vsub.f32 %v853, %v880
        %v902 = vsub.f32 %v854, %v882
        %v903 = vsub.f32 %v855, %v884
        %v904 = vsub.f32 %v856, %v886
        %v905 = vsub.f32 %v857, %v888
        %v906 = vsub.f32 %v858, %v890
        %v907 = vmul.f32 %v891, 1.442695
        %v908 = vpow.pop %v907
        %v909 = vmul.f32 %v892, 1.442695
        %v910 = vpow.pop %v909
        %v911 = vmul.f32 %v893, 1.442695
        %v912 = vpow.pop %v911
        %v913 = vmul.f32 %v894, 1.442695
        %v914 = vpow.pop %v913
        %v915 = vmul.f32 %v895, 1.442695
        %v916 = vpow.pop %v915
        %v917 = vmul.f32 %v896, 1.442695
        %v918 = vpow.pop %v917
        %v919 = vmul.f32 %v897, 1.442695
        %v920 = vpow.pop %v919
        %v921 = vmul.f32 %v898, 1.442695
        %v922 = vpow.pop %v921
        %v923 = vmul.f32 %v899, 1.442695
        %v924 = vpow.pop %v923
        %v925 = vmul.f32 %v900, 1.442695
        %v926 = vpow.pop %v925
        %v927 = vmul.f32 %v901, 1.442695
        %v928 = vpow.pop %v927
        %v929 = vmul.f32 %v902, 1.442695
        %v930 = vpow.pop %v929
        %v931 = vmul.f32 %v903, 1.442695
        %v932 = vpow.pop %v931
        %v933 = vmul.f32 %v904, 1.442695
        %v934 = vpow.pop %v933
        %v935 = vmul.f32 %v905, 1.442695
        %v936 = vpow.pop %v935
        %v937 = vmul.f32 %v906, 1.442695
        %v938 = vpow.pop %v937
        %939 = vadd.xlane.f32.xlu0 %v908
        %v940 = vpop.xlane.xlu0 %939
        %941 = vadd.xlane.f32.xlu0 %v910
        %v942 = vpop.xlane.xlu0 %941
        %943 = vadd.xlane.f32.xlu0 %v912
        %v944 = vpop.xlane.xlu0 %943
        %945 = vadd.xlane.f32.xlu0 %v914
        %v946 = vpop.xlane.xlu0 %945
        %947 = vadd.xlane.f32.xlu0 %v916
        %v948 = vpop.xlane.xlu0 %947
        %949 = vadd.xlane.f32.xlu0 %v918
        %v950 = vpop.xlane.xlu0 %949
        %951 = vadd.xlane.f32.xlu0 %v920
        %v952 = vpop.xlane.xlu0 %951
        %953 = vadd.xlane.f32.xlu0 %v922
        %v954 = vpop.xlane.xlu0 %953
        %955 = vadd.xlane.f32.xlu0 %v924
        %v956 = vpop.xlane.xlu0 %955
        %957 = vadd.xlane.f32.xlu0 %v926
        %v958 = vpop.xlane.xlu0 %957
        %959 = vadd.xlane.f32.xlu0 %v928
        %v960 = vpop.xlane.xlu0 %959
        %961 = vadd.xlane.f32.xlu0 %v930
        %v962 = vpop.xlane.xlu0 %961
        %963 = vadd.xlane.f32.xlu0 %v932
        %v964 = vpop.xlane.xlu0 %963
        %965 = vadd.xlane.f32.xlu0 %v934
        %v966 = vpop.xlane.xlu0 %965
        %967 = vadd.xlane.f32.xlu0 %v936
        %v968 = vpop.xlane.xlu0 %967
        %969 = vadd.xlane.f32.xlu0 %v938
        %v970 = vpop.xlane.xlu0 %969
        %v971 = vrcp.pop %v940
        %v972 = vrcp.pop %v942
        %v973 = vrcp.pop %v944
        %v974 = vrcp.pop %v946
        %v975 = vrcp.pop %v948
        %v976 = vrcp.pop %v950
        %v977 = vrcp.pop %v952
        %v978 = vrcp.pop %v954
        %v979 = vrcp.pop %v956
        %v980 = vrcp.pop %v958
        %v981 = vrcp.pop %v960
        %v982 = vrcp.pop %v962
        %v983 = vrcp.pop %v964
        %v984 = vrcp.pop %v966
        %v985 = vrcp.pop %v968
        %v986 = vrcp.pop %v970
        %v987 = vmul.f32 %v908, %v971
        %v988 = vmul.f32 %v910, %v972
        %v989 = vmul.f32 %v912, %v973
        %v990 = vmul.f32 %v914, %v974
        %v991 = vmul.f32 %v916, %v975
        %v992 = vmul.f32 %v918, %v976
        %v993 = vmul.f32 %v920, %v977
        %v994 = vmul.f32 %v922, %v978
        %v995 = vmul.f32 %v924, %v979
        %v996 = vmul.f32 %v926, %v980
        %v997 = vmul.f32 %v928, %v981
        %v998 = vmul.f32 %v930, %v982
        %v999 = vmul.f32 %v932, %v983
        %v1000 = vmul.f32 %v934, %v984
        %v1001 = vmul.f32 %v936, %v985
        %v1002 = vmul.f32 %v938, %v986
        %v1003 = vpack.c.bf16 %v988, %v987
        %v1004 = vpack.c.bf16 %v990, %v989
        %v1005 = vpack.c.bf16 %v992, %v991
        %v1006 = vpack.c.bf16 %v994, %v993
        %v1007 = vpack.c.bf16 %v996, %v995
        %v1008 = vpack.c.bf16 %v998, %v997
        %v1009 = vpack.c.bf16 %v1000, %v999
        %v1010 = vpack.c.bf16 %v1002, %v1001
        %v1027 = vunpack.c.l.b16 %v614
        %v1028 = vunpack.c.l.b16 %v615
        %v1029 = vunpack.c.l.b16 %v616
        %v1030 = vunpack.c.l.b16 %v617
        %v1031 = vunpack.c.l.b16 %v618
        %v1032 = vunpack.c.l.b16 %v619
        %v1033 = vunpack.c.l.b16 %v620
        %v1034 = vunpack.c.l.b16 %v621
        %v1035 = vunpack.c.l.b16 %v622
        %v1036 = vunpack.c.l.b16 %v623
        %v1037 = vunpack.c.l.b16 %v624
        %v1038 = vunpack.c.l.b16 %v625
        %v1039 = vunpack.c.l.b16 %v626
        %v1040 = vunpack.c.l.b16 %v627
        %v1041 = vunpack.c.l.b16 %v628
        %v1042 = vunpack.c.l.b16 %v629
        %v1043 = vpack.c.b16 %v1028, %v1027
        %v1044 = vpack.c.b16 %v1030, %v1029
        %v1045 = vpack.c.b16 %v1032, %v1031
        %v1046 = vpack.c.b16 %v1034, %v1033
        %v1047 = vpack.c.b16 %v1036, %v1035
        %v1048 = vpack.c.b16 %v1038, %v1037
        %v1049 = vpack.c.b16 %v1040, %v1039
        %v1050 = vpack.c.b16 %v1042, %v1041
        %1059 = vmatpush.bf16.msra.mxu0 %v1050
        %1060 = vmatpush.bf16.msra.mxu0 %v1049
        %1061 = vmatpush.bf16.msra.mxu0 %v1048
        %1062 = vmatpush.bf16.msra.mxu0 %v1047
        %1063 = vmatpush.bf16.msra.mxu0 %v1046
        %1064 = vmatpush.bf16.msra.mxu0 %v1045
        %1065 = vmatpush.bf16.msra.mxu0 %v1044
        %1066 = vmatpush.bf16.msra.mxu0 %v1043
        %1067 = vmatmul.bf16.gmra.mxu0 %v1003
        %v1068 = vpop.f32.mrf.mxu0
        %v1069 = vadd.f32 0.0, %v1068
        %v1070 = vpop.f32.mrf.mxu0
        %v1071 = vadd.f32 0.0, %v1070
        %1072 = vmatmul.bf16.gmra.mxu0 %v1004
        %v1073 = vpop.f32.mrf.mxu0
        %v1074 = vadd.f32 0.0, %v1073
        %v1075 = vpop.f32.mrf.mxu0
        %v1076 = vadd.f32 0.0, %v1075
        %1077 = vmatmul.bf16.gmra.mxu0 %v1005
        %v1078 = vpop.f32.mrf.mxu0
        %v1079 = vadd.f32 0.0, %v1078
        %v1080 = vpop.f32.mrf.mxu0
        %v1081 = vadd.f32 0.0, %v1080
        %1082 = vmatmul.bf16.gmra.mxu0 %v1006
        %v1083 = vpop.f32.mrf.mxu0
        %v1084 = vadd.f32 0.0, %v1083
        %v1085 = vpop.f32.mrf.mxu0
        %v1086 = vadd.f32 0.0, %v1085
        %1087 = vmatmul.bf16.gmra.mxu0 %v1007
        %v1088 = vpop.f32.mrf.mxu0
        %v1089 = vadd.f32 0.0, %v1088
        %v1090 = vpop.f32.mrf.mxu0
        %v1091 = vadd.f32 0.0, %v1090
        %1092 = vmatmul.bf16.gmra.mxu0 %v1008
        %v1093 = vpop.f32.mrf.mxu0
        %v1094 = vadd.f32 0.0, %v1093
        %v1095 = vpop.f32.mrf.mxu0
        %v1096 = vadd.f32 0.0, %v1095
        %1097 = vmatmul.bf16.gmra.mxu0 %v1009
        %v1098 = vpop.f32.mrf.mxu0
        %v1099 = vadd.f32 0.0, %v1098
        %v1100 = vpop.f32.mrf.mxu0
        %v1101 = vadd.f32 0.0, %v1100
        %1102 = vmatmul.bf16.gmra.mxu0 %v1010
        %v1103 = vpop.f32.mrf.mxu0
        %v1104 = vadd.f32 0.0, %v1103
        %v1105 = vpop.f32.mrf.mxu0
        %v1106 = vadd.f32 0.0, %v1105
        %1107 = vdwg.mxu0
        %v1108 = vpack.c.bf16 %v1069, %v1069
        %v1109 = vpack.c.bf16 %v1071, %v1071
        %v1110 = vpack.c.bf16 %v1074, %v1074
        %v1111 = vpack.c.bf16 %v1076, %v1076
        %v1112 = vpack.c.bf16 %v1079, %v1079
        %v1113 = vpack.c.bf16 %v1081, %v1081
        %v1114 = vpack.c.bf16 %v1084, %v1084
        %v1115 = vpack.c.bf16 %v1086, %v1086
        %v1116 = vpack.c.bf16 %v1089, %v1089
        %v1117 = vpack.c.bf16 %v1091, %v1091
        %v1118 = vpack.c.bf16 %v1094, %v1094
        %v1119 = vpack.c.bf16 %v1096, %v1096
        %v1120 = vpack.c.bf16 %v1099, %v1099
        %v1121 = vpack.c.bf16 %v1101, %v1101
        %v1122 = vpack.c.bf16 %v1104, %v1104
        %v1123 = vpack.c.bf16 %v1106, %v1106
        %vm1124 = vcmask 257024
        %1125 = vst.msk [vmem:[#allocation2] sm:$0xf] %vm1124, %v1108
        %1126 = vst.msk [vmem:[#allocation2 + $0x4] sm:$0xf] %vm1124, %v1109
        %1127 = vst.msk [vmem:[#allocation2 + $0x8] sm:$0xf] %vm1124, %v1110
        %1128 = vst.msk [vmem:[#allocation2 + $0xc] sm:$0xf] %vm1124, %v1111
        %1129 = vst.msk [vmem:[#allocation2 + $0x10] sm:$0xf] %vm1124, %v1112
        %1130 = vst.msk [vmem:[#allocation2 + $0x14] sm:$0xf] %vm1124, %v1113
        %1131 = vst.msk [vmem:[#allocation2 + $0x18] sm:$0xf] %vm1124, %v1114
        %1132 = vst.msk [vmem:[#allocation2 + $0x1c] sm:$0xf] %vm1124, %v1115
        %1133 = vst.msk [vmem:[#allocation2 + $0x20] sm:$0xf] %vm1124, %v1116
        %1134 = vst.msk [vmem:[#allocation2 + $0x24] sm:$0xf] %vm1124, %v1117
        %1135 = vst.msk [vmem:[#allocation2 + $0x28] sm:$0xf] %vm1124, %v1118
        %1136 = vst.msk [vmem:[#allocation2 + $0x2c] sm:$0xf] %vm1124, %v1119
        %1137 = vst.msk [vmem:[#allocation2 + $0x30] sm:$0xf] %vm1124, %v1120
        %1138 = vst.msk [vmem:[#allocation2 + $0x34] sm:$0xf] %vm1124, %v1121
        %1139 = vst.msk [vmem:[#allocation2 + $0x38] sm:$0xf] %vm1124, %v1122
        %1140 = vst.msk [vmem:[#allocation2 + $0x3c] sm:$0xf] %vm1124, %v1123
        %1141 = vrot.lane.b32.xlu0 %v697, 96
        %v1142 = vpop.permute.xlu0 %1141
        %1143 = vrot.lane.b32.xlu0 %v698, 96
        %v1144 = vpop.permute.xlu0 %1143
        %1145 = vrot.lane.b32.xlu0 %v699, 96
        %v1146 = vpop.permute.xlu0 %1145
        %1147 = vrot.lane.b32.xlu0 %v700, 96
        %v1148 = vpop.permute.xlu0 %1147
        %1149 = vrot.lane.b32.xlu0 %v701, 96
        %v1150 = vpop.permute.xlu0 %1149
        %1151 = vrot.lane.b32.xlu0 %v702, 96
        %v1152 = vpop.permute.xlu0 %1151
        %1153 = vrot.lane.b32.xlu0 %v703, 96
        %v1154 = vpop.permute.xlu0 %1153
        %1155 = vrot.lane.b32.xlu0 %v704, 96
        %v1156 = vpop.permute.xlu0 %1155
        %1157 = vrot.lane.b32.xlu0 %v737, 96
        %v1158 = vpop.permute.xlu0 %1157
        %1159 = vrot.lane.b32.xlu0 %v738, 96
        %v1160 = vpop.permute.xlu0 %1159
        %1161 = vrot.lane.b32.xlu0 %v739, 96
        %v1162 = vpop.permute.xlu0 %1161
        %1163 = vrot.lane.b32.xlu0 %v740, 96
        %v1164 = vpop.permute.xlu0 %1163
        %1165 = vrot.lane.b32.xlu0 %v741, 96
        %v1166 = vpop.permute.xlu0 %1165
        %1167 = vrot.lane.b32.xlu0 %v742, 96
        %v1168 = vpop.permute.xlu0 %1167
        %1169 = vrot.lane.b32.xlu0 %v743, 96
        %v1170 = vpop.permute.xlu0 %1169
        %1171 = vrot.lane.b32.xlu0 %v744, 96
        %v1172 = vpop.permute.xlu0 %1171
        %v1174 = vsel %vm745, %v1142, 0
        %v1177 = vsel %vm745, %v1144, 0
        %v1180 = vsel %vm745, %v1146, 0
        %v1183 = vsel %vm745, %v1148, 0
        %v1186 = vsel %vm745, %v1150, 0
        %v1189 = vsel %vm745, %v1152, 0
        %v1192 = vsel %vm745, %v1154, 0
        %v1195 = vsel %vm745, %v1156, 0
        %v1198 = vsel %vm745, %v1158, 0
        %v1201 = vsel %vm745, %v1160, 0
        %v1204 = vsel %vm745, %v1162, 0
        %v1207 = vsel %vm745, %v1164, 0
        %v1210 = vsel %vm745, %v1166, 0
        %v1213 = vsel %vm745, %v1168, 0
        %v1216 = vsel %vm745, %v1170, 0
        %v1219 = vsel %vm745, %v1172, 0
        %1221 = vmatpush.bf16.xpose.msra.mxu0 %v1219
        %1222 = vmatpush.bf16.xpose.msra.mxu0 %v1216
        %1223 = vmatpush.bf16.xpose.msra.mxu0 %v1213
        %1224 = vmatpush.bf16.xpose.msra.mxu0 %v1210
        %1225 = vmatpush.bf16.xpose.msra.mxu0 %v1207
        %1226 = vmatpush.bf16.xpose.msra.mxu0 %v1204
        %1227 = vmatpush.bf16.xpose.msra.mxu0 %v1201
        %1228 = vmatpush.bf16.xpose.msra.mxu0 %v1198
        %1229 = vmatmul.bf16.gmra.mxu0 %v1174
        %v1230 = vpop.f32.mrf.mxu0
        %v1231 = vadd.f32 0.0, %v1230
        %v1232 = vpop.f32.mrf.mxu0
        %v1233 = vadd.f32 0.0, %v1232
        %1234 = vmatmul.bf16.gmra.mxu0 %v1177
        %v1235 = vpop.f32.mrf.mxu0
        %v1236 = vadd.f32 0.0, %v1235
        %v1237 = vpop.f32.mrf.mxu0
        %v1238 = vadd.f32 0.0, %v1237
        %1239 = vmatmul.bf16.gmra.mxu0 %v1180
        %v1240 = vpop.f32.mrf.mxu0
        %v1241 = vadd.f32 0.0, %v1240
        %v1242 = vpop.f32.mrf.mxu0
        %v1243 = vadd.f32 0.0, %v1242
        %1244 = vmatmul.bf16.gmra.mxu0 %v1183
        %v1245 = vpop.f32.mrf.mxu0
        %v1246 = vadd.f32 0.0, %v1245
        %v1247 = vpop.f32.mrf.mxu0
        %v1248 = vadd.f32 0.0, %v1247
        %1249 = vmatmul.bf16.gmra.mxu0 %v1186
        %v1250 = vpop.f32.mrf.mxu0
        %v1251 = vadd.f32 0.0, %v1250
        %v1252 = vpop.f32.mrf.mxu0
        %v1253 = vadd.f32 0.0, %v1252
        %1254 = vmatmul.bf16.gmra.mxu0 %v1189
        %v1255 = vpop.f32.mrf.mxu0
        %v1256 = vadd.f32 0.0, %v1255
        %v1257 = vpop.f32.mrf.mxu0
        %v1258 = vadd.f32 0.0, %v1257
        %1259 = vmatmul.bf16.gmra.mxu0 %v1192
        %v1260 = vpop.f32.mrf.mxu0
        %v1261 = vadd.f32 0.0, %v1260
        %v1262 = vpop.f32.mrf.mxu0
        %v1263 = vadd.f32 0.0, %v1262
        %1264 = vmatmul.bf16.gmra.mxu0 %v1195
        %v1265 = vpop.f32.mrf.mxu0
        %v1266 = vadd.f32 0.0, %v1265
        %v1267 = vpop.f32.mrf.mxu0
        %v1268 = vadd.f32 0.0, %v1267
        %1269 = vdwg.mxu0
        %v1270 = vsel %vm649, %v1231, -1e+30
        %v1271 = vsel %vm650, %v1233, -1e+30
        %v1272 = vsel %vm651, %v1236, -1e+30
        %v1273 = vsel %vm652, %v1238, -1e+30
        %v1274 = vsel %vm653, %v1241, -1e+30
        %v1275 = vsel %vm654, %v1243, -1e+30
        %v1276 = vsel %vm655, %v1246, -1e+30
        %v1277 = vsel %vm656, %v1248, -1e+30
        %v1278 = vsel %vm657, %v1251, -1e+30
        %v1279 = vsel %vm658, %v1253, -1e+30
        %v1280 = vsel %vm659, %v1256, -1e+30
        %v1281 = vsel %vm660, %v1258, -1e+30
        %v1282 = vsel %vm661, %v1261, -1e+30
        %v1283 = vsel %vm662, %v1263, -1e+30
        %v1284 = vsel %vm663, %v1266, -1e+30
        %v1285 = vsel %vm664, %v1268, -1e+30
        %1286 = vmax.xlane.f32.xlu0 %v1270
        %v1287 = vpop.xlane.xlu0 %1286
        %1288 = vmax.xlane.f32.xlu0 %v1271
        %v1289 = vpop.xlane.xlu0 %1288
        %1290 = vmax.xlane.f32.xlu0 %v1272
        %v1291 = vpop.xlane.xlu0 %1290
        %1292 = vmax.xlane.f32.xlu0 %v1273
        %v1293 = vpop.xlane.xlu0 %1292
        %1294 = vmax.xlane.f32.xlu0 %v1274
        %v1295 = vpop.xlane.xlu0 %1294
        %1296 = vmax.xlane.f32.xlu0 %v1275
        %v1297 = vpop.xlane.xlu0 %1296
        %1298 = vmax.xlane.f32.xlu0 %v1276
        %v1299 = vpop.xlane.xlu0 %1298
        %1300 = vmax.xlane.f32.xlu0 %v1277
        %v1301 = vpop.xlane.xlu0 %1300
        %1302 = vmax.xlane.f32.xlu0 %v1278
        %v1303 = vpop.xlane.xlu0 %1302
        %1304 = vmax.xlane.f32.xlu0 %v1279
        %v1305 = vpop.xlane.xlu0 %1304
        %1306 = vmax.xlane.f32.xlu0 %v1280
        %v1307 = vpop.xlane.xlu0 %1306
        %1308 = vmax.xlane.f32.xlu0 %v1281
        %v1309 = vpop.xlane.xlu0 %1308
        %1310 = vmax.xlane.f32.xlu0 %v1282
        %v1311 = vpop.xlane.xlu0 %1310
        %1312 = vmax.xlane.f32.xlu0 %v1283
        %v1313 = vpop.xlane.xlu0 %1312
        %1314 = vmax.xlane.f32.xlu0 %v1284
        %v1315 = vpop.xlane.xlu0 %1314
        %1316 = vmax.xlane.f32.xlu0 %v1285
        %v1317 = vpop.xlane.xlu0 %1316
        %v1318 = vsub.f32 %v1270, %v1287
        %v1319 = vsub.f32 %v1271, %v1289
        %v1320 = vsub.f32 %v1272, %v1291
        %v1321 = vsub.f32 %v1273, %v1293
        %v1322 = vsub.f32 %v1274, %v1295
        %v1323 = vsub.f32 %v1275, %v1297
        %v1324 = vsub.f32 %v1276, %v1299
        %v1325 = vsub.f32 %v1277, %v1301
        %v1326 = vsub.f32 %v1278, %v1303
        %v1327 = vsub.f32 %v1279, %v1305
        %v1328 = vsub.f32 %v1280, %v1307
        %v1329 = vsub.f32 %v1281, %v1309
        %v1330 = vsub.f32 %v1282, %v1311
        %v1331 = vsub.f32 %v1283, %v1313
        %v1332 = vsub.f32 %v1284, %v1315
        %v1333 = vsub.f32 %v1285, %v1317
        %v1334 = vmul.f32 %v1318, 1.442695
        %v1335 = vpow.pop %v1334
        %v1336 = vmul.f32 %v1319, 1.442695
        %v1337 = vpow.pop %v1336
        %v1338 = vmul.f32 %v1320, 1.442695
        %v1339 = vpow.pop %v1338
        %v1340 = vmul.f32 %v1321, 1.442695
        %v1341 = vpow.pop %v1340
        %v1342 = vmul.f32 %v1322, 1.442695
        %v1343 = vpow.pop %v1342
        %v1344 = vmul.f32 %v1323, 1.442695
        %v1345 = vpow.pop %v1344
        %v1346 = vmul.f32 %v1324, 1.442695
        %v1347 = vpow.pop %v1346
        %v1348 = vmul.f32 %v1325, 1.442695
        %v1349 = vpow.pop %v1348
        %v1350 = vmul.f32 %v1326, 1.442695
        %v1351 = vpow.pop %v1350
        %v1352 = vmul.f32 %v1327, 1.442695
        %v1353 = vpow.pop %v1352
        %v1354 = vmul.f32 %v1328, 1.442695
        %v1355 = vpow.pop %v1354
        %v1356 = vmul.f32 %v1329, 1.442695
        %v1357 = vpow.pop %v1356
        %v1358 = vmul.f32 %v1330, 1.442695
        %v1359 = vpow.pop %v1358
        %v1360 = vmul.f32 %v1331, 1.442695
        %v1361 = vpow.pop %v1360
        %v1362 = vmul.f32 %v1332, 1.442695
        %v1363 = vpow.pop %v1362
        %v1364 = vmul.f32 %v1333, 1.442695
        %v1365 = vpow.pop %v1364
        %1366 = vadd.xlane.f32.xlu0 %v1335
        %v1367 = vpop.xlane.xlu0 %1366
        %1368 = vadd.xlane.f32.xlu0 %v1337
        %v1369 = vpop.xlane.xlu0 %1368
        %1370 = vadd.xlane.f32.xlu0 %v1339
        %v1371 = vpop.xlane.xlu0 %1370
        %1372 = vadd.xlane.f32.xlu0 %v1341
        %v1373 = vpop.xlane.xlu0 %1372
        %1374 = vadd.xlane.f32.xlu0 %v1343
        %v1375 = vpop.xlane.xlu0 %1374
        %1376 = vadd.xlane.f32.xlu0 %v1345
        %v1377 = vpop.xlane.xlu0 %1376
        %1378 = vadd.xlane.f32.xlu0 %v1347
        %v1379 = vpop.xlane.xlu0 %1378
        %1380 = vadd.xlane.f32.xlu0 %v1349
        %v1381 = vpop.xlane.xlu0 %1380
        %1382 = vadd.xlane.f32.xlu0 %v1351
        %v1383 = vpop.xlane.xlu0 %1382
        %1384 = vadd.xlane.f32.xlu0 %v1353
        %v1385 = vpop.xlane.xlu0 %1384
        %1386 = vadd.xlane.f32.xlu0 %v1355
        %v1387 = vpop.xlane.xlu0 %1386
        %1388 = vadd.xlane.f32.xlu0 %v1357
        %v1389 = vpop.xlane.xlu0 %1388
        %1390 = vadd.xlane.f32.xlu0 %v1359
        %v1391 = vpop.xlane.xlu0 %1390
        %1392 = vadd.xlane.f32.xlu0 %v1361
        %v1393 = vpop.xlane.xlu0 %1392
        %1394 = vadd.xlane.f32.xlu0 %v1363
        %v1395 = vpop.xlane.xlu0 %1394
        %1396 = vadd.xlane.f32.xlu0 %v1365
        %v1397 = vpop.xlane.xlu0 %1396
        %v1398 = vrcp.pop %v1367
        %v1399 = vrcp.pop %v1369
        %v1400 = vrcp.pop %v1371
        %v1401 = vrcp.pop %v1373
        %v1402 = vrcp.pop %v1375
        %v1403 = vrcp.pop %v1377
        %v1404 = vrcp.pop %v1379
        %v1405 = vrcp.pop %v1381
        %v1406 = vrcp.pop %v1383
        %v1407 = vrcp.pop %v1385
        %v1408 = vrcp.pop %v1387
        %v1409 = vrcp.pop %v1389
        %v1410 = vrcp.pop %v1391
        %v1411 = vrcp.pop %v1393
        %v1412 = vrcp.pop %v1395
        %v1413 = vrcp.pop %v1397
        %v1414 = vmul.f32 %v1335, %v1398
        %v1415 = vmul.f32 %v1337, %v1399
        %v1416 = vmul.f32 %v1339, %v1400
        %v1417 = vmul.f32 %v1341, %v1401
        %v1418 = vmul.f32 %v1343, %v1402
        %v1419 = vmul.f32 %v1345, %v1403
        %v1420 = vmul.f32 %v1347, %v1404
        %v1421 = vmul.f32 %v1349, %v1405
        %v1422 = vmul.f32 %v1351, %v1406
        %v1423 = vmul.f32 %v1353, %v1407
        %v1424 = vmul.f32 %v1355, %v1408
        %v1425 = vmul.f32 %v1357, %v1409
        %v1426 = vmul.f32 %v1359, %v1410
        %v1427 = vmul.f32 %v1361, %v1411
        %v1428 = vmul.f32 %v1363, %v1412
        %v1429 = vmul.f32 %v1365, %v1413
        %v1430 = vpack.c.bf16 %v1415, %v1414
        %v1431 = vpack.c.bf16 %v1417, %v1416
        %v1432 = vpack.c.bf16 %v1419, %v1418
        %v1433 = vpack.c.bf16 %v1421, %v1420
        %v1434 = vpack.c.bf16 %v1423, %v1422
        %v1435 = vpack.c.bf16 %v1425, %v1424
        %v1436 = vpack.c.bf16 %v1427, %v1426
        %v1437 = vpack.c.bf16 %v1429, %v1428
        %1438 = vrot.lane.b32.xlu0 %v1043, 96
        %v1439 = vpop.permute.xlu0 %1438
        %1440 = vrot.lane.b32.xlu0 %v1044, 96
        %v1441 = vpop.permute.xlu0 %1440
        %1442 = vrot.lane.b32.xlu0 %v1045, 96
        %v1443 = vpop.permute.xlu0 %1442
        %1444 = vrot.lane.b32.xlu0 %v1046, 96
        %v1445 = vpop.permute.xlu0 %1444
        %1446 = vrot.lane.b32.xlu0 %v1047, 96
        %v1447 = vpop.permute.xlu0 %1446
        %1448 = vrot.lane.b32.xlu0 %v1048, 96
        %v1449 = vpop.permute.xlu0 %1448
        %1450 = vrot.lane.b32.xlu0 %v1049, 96
        %v1451 = vpop.permute.xlu0 %1450
        %1452 = vrot.lane.b32.xlu0 %v1050, 96
        %v1453 = vpop.permute.xlu0 %1452
        %1462 = vmatpush.bf16.msra.mxu0 %v1453
        %1463 = vmatpush.bf16.msra.mxu0 %v1451
        %1464 = vmatpush.bf16.msra.mxu0 %v1449
        %1465 = vmatpush.bf16.msra.mxu0 %v1447
        %1466 = vmatpush.bf16.msra.mxu0 %v1445
        %1467 = vmatpush.bf16.msra.mxu0 %v1443
        %1468 = vmatpush.bf16.msra.mxu0 %v1441
        %1469 = vmatpush.bf16.msra.mxu0 %v1439
        %1470 = vmatmul.bf16.gmra.mxu0 %v1430
        %v1471 = vpop.f32.mrf.mxu0
        %v1472 = vadd.f32 0.0, %v1471
        %v1473 = vpop.f32.mrf.mxu0
        %v1474 = vadd.f32 0.0, %v1473
        %1475 = vmatmul.bf16.gmra.mxu0 %v1431
        %v1476 = vpop.f32.mrf.mxu0
        %v1477 = vadd.f32 0.0, %v1476
        %v1478 = vpop.f32.mrf.mxu0
        %v1479 = vadd.f32 0.0, %v1478
        %1480 = vmatmul.bf16.gmra.mxu0 %v1432
        %v1481 = vpop.f32.mrf.mxu0
        %v1482 = vadd.f32 0.0, %v1481
        %v1483 = vpop.f32.mrf.mxu0
        %v1484 = vadd.f32 0.0, %v1483
        %1485 = vmatmul.bf16.gmra.mxu0 %v1433
        %v1486 = vpop.f32.mrf.mxu0
        %v1487 = vadd.f32 0.0, %v1486
        %v1488 = vpop.f32.mrf.mxu0
        %v1489 = vadd.f32 0.0, %v1488
        %1490 = vmatmul.bf16.gmra.mxu0 %v1434
        %v1491 = vpop.f32.mrf.mxu0
        %v1492 = vadd.f32 0.0, %v1491
        %v1493 = vpop.f32.mrf.mxu0
        %v1494 = vadd.f32 0.0, %v1493
        %1495 = vmatmul.bf16.gmra.mxu0 %v1435
        %v1496 = vpop.f32.mrf.mxu0
        %v1497 = vadd.f32 0.0, %v1496
        %v1498 = vpop.f32.mrf.mxu0
        %v1499 = vadd.f32 0.0, %v1498
        %1500 = vmatmul.bf16.gmra.mxu0 %v1436
        %v1501 = vpop.f32.mrf.mxu0
        %v1502 = vadd.f32 0.0, %v1501
        %v1503 = vpop.f32.mrf.mxu0
        %v1504 = vadd.f32 0.0, %v1503
        %1505 = vmatmul.bf16.gmra.mxu0 %v1437
        %v1506 = vpop.f32.mrf.mxu0
        %v1507 = vadd.f32 0.0, %v1506
        %v1508 = vpop.f32.mrf.mxu0
        %v1509 = vadd.f32 0.0, %v1508
        %1510 = vdwg.mxu0
        %v1511 = vpack.c.bf16 %v1472, %v1472
        %v1512 = vpack.c.bf16 %v1474, %v1474
        %v1513 = vpack.c.bf16 %v1477, %v1477
        %v1514 = vpack.c.bf16 %v1479, %v1479
        %v1515 = vpack.c.bf16 %v1482, %v1482
        %v1516 = vpack.c.bf16 %v1484, %v1484
        %v1517 = vpack.c.bf16 %v1487, %v1487
        %v1518 = vpack.c.bf16 %v1489, %v1489
        %v1519 = vpack.c.bf16 %v1492, %v1492
        %v1520 = vpack.c.bf16 %v1494, %v1494
        %v1521 = vpack.c.bf16 %v1497, %v1497
        %v1522 = vpack.c.bf16 %v1499, %v1499
        %v1523 = vpack.c.bf16 %v1502, %v1502
        %v1524 = vpack.c.bf16 %v1504, %v1504
        %v1525 = vpack.c.bf16 %v1507, %v1507
        %v1526 = vpack.c.bf16 %v1509, %v1509
        %1543 = vrot.lane.b32.xlu0 %v1511, 32
        %v1544 = vpop.permute.xlu0 %1543
        %1545 = vrot.lane.b32.xlu0 %v1512, 32
        %v1546 = vpop.permute.xlu0 %1545
        %1547 = vrot.lane.b32.xlu0 %v1513, 32
        %v1548 = vpop.permute.xlu0 %1547
        %1549 = vrot.lane.b32.xlu0 %v1514, 32
        %v1550 = vpop.permute.xlu0 %1549
        %1551 = vrot.lane.b32.xlu0 %v1515, 32
        %v1552 = vpop.permute.xlu0 %1551
        %1553 = vrot.lane.b32.xlu0 %v1516, 32
        %v1554 = vpop.permute.xlu0 %1553
        %1555 = vrot.lane.b32.xlu0 %v1517, 32
        %v1556 = vpop.permute.xlu0 %1555
        %1557 = vrot.lane.b32.xlu0 %v1518, 32
        %v1558 = vpop.permute.xlu0 %1557
        %1559 = vrot.lane.b32.xlu0 %v1519, 32
        %v1560 = vpop.permute.xlu0 %1559
        %1561 = vrot.lane.b32.xlu0 %v1520, 32
        %v1562 = vpop.permute.xlu0 %1561
        %1563 = vrot.lane.b32.xlu0 %v1521, 32
        %v1564 = vpop.permute.xlu0 %1563
        %1565 = vrot.lane.b32.xlu0 %v1522, 32
        %v1566 = vpop.permute.xlu0 %1565
        %1567 = vrot.lane.b32.xlu0 %v1523, 32
        %v1568 = vpop.permute.xlu0 %1567
        %1569 = vrot.lane.b32.xlu0 %v1524, 32
        %v1570 = vpop.permute.xlu0 %1569
        %1571 = vrot.lane.b32.xlu0 %v1525, 32
        %v1572 = vpop.permute.xlu0 %1571
        %1573 = vrot.lane.b32.xlu0 %v1526, 32
        %v1574 = vpop.permute.xlu0 %1573
        %vm1591 = vcmask 519424
        %1592 = vst.msk [vmem:[#allocation2] sm:$0xf] %vm1591, %v1544
        %1593 = vst.msk [vmem:[#allocation2 + $0x4] sm:$0xf] %vm1591, %v1546
        %1594 = vst.msk [vmem:[#allocation2 + $0x8] sm:$0xf] %vm1591, %v1548
        %1595 = vst.msk [vmem:[#allocation2 + $0xc] sm:$0xf] %vm1591, %v1550
        %1596 = vst.msk [vmem:[#allocation2 + $0x10] sm:$0xf] %vm1591, %v1552
        %1597 = vst.msk [vmem:[#allocation2 + $0x14] sm:$0xf] %vm1591, %v1554
        %1598 = vst.msk [vmem:[#allocation2 + $0x18] sm:$0xf] %vm1591, %v1556
        %1599 = vst.msk [vmem:[#allocation2 + $0x1c] sm:$0xf] %vm1591, %v1558
        %1600 = vst.msk [vmem:[#allocation2 + $0x20] sm:$0xf] %vm1591, %v1560
        %1601 = vst.msk [vmem:[#allocation2 + $0x24] sm:$0xf] %vm1591, %v1562
        %1602 = vst.msk [vmem:[#allocation2 + $0x28] sm:$0xf] %vm1591, %v1564
        %1603 = vst.msk [vmem:[#allocation2 + $0x2c] sm:$0xf] %vm1591, %v1566
        %1604 = vst.msk [vmem:[#allocation2 + $0x30] sm:$0xf] %vm1591, %v1568
        %1605 = vst.msk [vmem:[#allocation2 + $0x34] sm:$0xf] %vm1591, %v1570
        %1606 = vst.msk [vmem:[#allocation2 + $0x38] sm:$0xf] %vm1591, %v1572
        %1607 = vst.msk [vmem:[#allocation2 + $0x3c] sm:$0xf] %vm1591, %v1574
        %1608 = vrot.lane.b32.xlu0 %v697, 64
        %v1609 = vpop.permute.xlu0 %1608
        %1610 = vrot.lane.b32.xlu0 %v698, 64
        %v1611 = vpop.permute.xlu0 %1610
        %1612 = vrot.lane.b32.xlu0 %v699, 64
        %v1613 = vpop.permute.xlu0 %1612
        %1614 = vrot.lane.b32.xlu0 %v700, 64
        %v1615 = vpop.permute.xlu0 %1614
        %1616 = vrot.lane.b32.xlu0 %v701, 64
        %v1617 = vpop.permute.xlu0 %1616
        %1618 = vrot.lane.b32.xlu0 %v702, 64
        %v1619 = vpop.permute.xlu0 %1618
        %1620 = vrot.lane.b32.xlu0 %v703, 64
        %v1621 = vpop.permute.xlu0 %1620
        %1622 = vrot.lane.b32.xlu0 %v704, 64
        %v1623 = vpop.permute.xlu0 %1622
        %1624 = vrot.lane.b32.xlu0 %v737, 64
        %v1625 = vpop.permute.xlu0 %1624
        %1626 = vrot.lane.b32.xlu0 %v738, 64
        %v1627 = vpop.permute.xlu0 %1626
        %1628 = vrot.lane.b32.xlu0 %v739, 64
        %v1629 = vpop.permute.xlu0 %1628
        %1630 = vrot.lane.b32.xlu0 %v740, 64
        %v1631 = vpop.permute.xlu0 %1630
        %1632 = vrot.lane.b32.xlu0 %v741, 64
        %v1633 = vpop.permute.xlu0 %1632
        %1634 = vrot.lane.b32.xlu0 %v742, 64
        %v1635 = vpop.permute.xlu0 %1634
        %1636 = vrot.lane.b32.xlu0 %v743, 64
        %v1637 = vpop.permute.xlu0 %1636
        %1638 = vrot.lane.b32.xlu0 %v744, 64
        %v1639 = vpop.permute.xlu0 %1638
        %v1641 = vsel %vm745, %v1609, 0
        %v1644 = vsel %vm745, %v1611, 0
        %v1647 = vsel %vm745, %v1613, 0
        %v1650 = vsel %vm745, %v1615, 0
        %v1653 = vsel %vm745, %v1617, 0
        %v1656 = vsel %vm745, %v1619, 0
        %v1659 = vsel %vm745, %v1621, 0
        %v1662 = vsel %vm745, %v1623, 0
        %v1665 = vsel %vm745, %v1625, 0
        %v1668 = vsel %vm745, %v1627, 0
        %v1671 = vsel %vm745, %v1629, 0
        %v1674 = vsel %vm745, %v1631, 0
        %v1677 = vsel %vm745, %v1633, 0
        %v1680 = vsel %vm745, %v1635, 0
        %v1683 = vsel %vm745, %v1637, 0
        %v1686 = vsel %vm745, %v1639, 0
        %1688 = vmatpush.bf16.xpose.msra.mxu0 %v1686
        %1689 = vmatpush.bf16.xpose.msra.mxu0 %v1683
        %1690 = vmatpush.bf16.xpose.msra.mxu0 %v1680
        %1691 = vmatpush.bf16.xpose.msra.mxu0 %v1677
        %1692 = vmatpush.bf16.xpose.msra.mxu0 %v1674
        %1693 = vmatpush.bf16.xpose.msra.mxu0 %v1671
        %1694 = vmatpush.bf16.xpose.msra.mxu0 %v1668
        %1695 = vmatpush.bf16.xpose.msra.mxu0 %v1665
        %1696 = vmatmul.bf16.gmra.mxu0 %v1641
        %v1697 = vpop.f32.mrf.mxu0
        %v1698 = vadd.f32 0.0, %v1697
        %v1699 = vpop.f32.mrf.mxu0
        %v1700 = vadd.f32 0.0, %v1699
        %1701 = vmatmul.bf16.gmra.mxu0 %v1644
        %v1702 = vpop.f32.mrf.mxu0
        %v1703 = vadd.f32 0.0, %v1702
        %v1704 = vpop.f32.mrf.mxu0
        %v1705 = vadd.f32 0.0, %v1704
        %1706 = vmatmul.bf16.gmra.mxu0 %v1647
        %v1707 = vpop.f32.mrf.mxu0
        %v1708 = vadd.f32 0.0, %v1707
        %v1709 = vpop.f32.mrf.mxu0
        %v1710 = vadd.f32 0.0, %v1709
        %1711 = vmatmul.bf16.gmra.mxu0 %v1650
        %v1712 = vpop.f32.mrf.mxu0
        %v1713 = vadd.f32 0.0, %v1712
        %v1714 = vpop.f32.mrf.mxu0
        %v1715 = vadd.f32 0.0, %v1714
        %1716 = vmatmul.bf16.gmra.mxu0 %v1653
        %v1717 = vpop.f32.mrf.mxu0
        %v1718 = vadd.f32 0.0, %v1717
        %v1719 = vpop.f32.mrf.mxu0
        %v1720 = vadd.f32 0.0, %v1719
        %1721 = vmatmul.bf16.gmra.mxu0 %v1656
        %v1722 = vpop.f32.mrf.mxu0
        %v1723 = vadd.f32 0.0, %v1722
        %v1724 = vpop.f32.mrf.mxu0
        %v1725 = vadd.f32 0.0, %v1724
        %1726 = vmatmul.bf16.gmra.mxu0 %v1659
        %v1727 = vpop.f32.mrf.mxu0
        %v1728 = vadd.f32 0.0, %v1727
        %v1729 = vpop.f32.mrf.mxu0
        %v1730 = vadd.f32 0.0, %v1729
        %1731 = vmatmul.bf16.gmra.mxu0 %v1662
        %v1732 = vpop.f32.mrf.mxu0
        %v1733 = vadd.f32 0.0, %v1732
        %v1734 = vpop.f32.mrf.mxu0
        %v1735 = vadd.f32 0.0, %v1734
        %1736 = vdwg.mxu0
        %v1737 = vsel %vm649, %v1698, -1e+30
        %v1738 = vsel %vm650, %v1700, -1e+30
        %v1739 = vsel %vm651, %v1703, -1e+30
        %v1740 = vsel %vm652, %v1705, -1e+30
        %v1741 = vsel %vm653, %v1708, -1e+30
        %v1742 = vsel %vm654, %v1710, -1e+30
        %v1743 = vsel %vm655, %v1713, -1e+30
        %v1744 = vsel %vm656, %v1715, -1e+30
        %v1745 = vsel %vm657, %v1718, -1e+30
        %v1746 = vsel %vm658, %v1720, -1e+30
        %v1747 = vsel %vm659, %v1723, -1e+30
        %v1748 = vsel %vm660, %v1725, -1e+30
        %v1749 = vsel %vm661, %v1728, -1e+30
        %v1750 = vsel %vm662, %v1730, -1e+30
        %v1751 = vsel %vm663, %v1733, -1e+30
        %v1752 = vsel %vm664, %v1735, -1e+30
        %1753 = vmax.xlane.f32.xlu0 %v1737
        %v1754 = vpop.xlane.xlu0 %1753
        %1755 = vmax.xlane.f32.xlu0 %v1738
        %v1756 = vpop.xlane.xlu0 %1755
        %1757 = vmax.xlane.f32.xlu0 %v1739
        %v1758 = vpop.xlane.xlu0 %1757
        %1759 = vmax.xlane.f32.xlu0 %v1740
        %v1760 = vpop.xlane.xlu0 %1759
        %1761 = vmax.xlane.f32.xlu0 %v1741
        %v1762 = vpop.xlane.xlu0 %1761
        %1763 = vmax.xlane.f32.xlu0 %v1742
        %v1764 = vpop.xlane.xlu0 %1763
        %1765 = vmax.xlane.f32.xlu0 %v1743
        %v1766 = vpop.xlane.xlu0 %1765
        %1767 = vmax.xlane.f32.xlu0 %v1744
        %v1768 = vpop.xlane.xlu0 %1767
        %1769 = vmax.xlane.f32.xlu0 %v1745
        %v1770 = vpop.xlane.xlu0 %1769
        %1771 = vmax.xlane.f32.xlu0 %v1746
        %v1772 = vpop.xlane.xlu0 %1771
        %1773 = vmax.xlane.f32.xlu0 %v1747
        %v1774 = vpop.xlane.xlu0 %1773
        %1775 = vmax.xlane.f32.xlu0 %v1748
        %v1776 = vpop.xlane.xlu0 %1775
        %1777 = vmax.xlane.f32.xlu0 %v1749
        %v1778 = vpop.xlane.xlu0 %1777
        %1779 = vmax.xlane.f32.xlu0 %v1750
        %v1780 = vpop.xlane.xlu0 %1779
        %1781 = vmax.xlane.f32.xlu0 %v1751
        %v1782 = vpop.xlane.xlu0 %1781
        %1783 = vmax.xlane.f32.xlu0 %v1752
        %v1784 = vpop.xlane.xlu0 %1783
        %v1785 = vsub.f32 %v1737, %v1754
        %v1786 = vsub.f32 %v1738, %v1756
        %v1787 = vsub.f32 %v1739, %v1758
        %v1788 = vsub.f32 %v1740, %v1760
        %v1789 = vsub.f32 %v1741, %v1762
        %v1790 = vsub.f32 %v1742, %v1764
        %v1791 = vsub.f32 %v1743, %v1766
        %v1792 = vsub.f32 %v1744, %v1768
        %v1793 = vsub.f32 %v1745, %v1770
        %v1794 = vsub.f32 %v1746, %v1772
        %v1795 = vsub.f32 %v1747, %v1774
        %v1796 = vsub.f32 %v1748, %v1776
        %v1797 = vsub.f32 %v1749, %v1778
        %v1798 = vsub.f32 %v1750, %v1780
        %v1799 = vsub.f32 %v1751, %v1782
        %v1800 = vsub.f32 %v1752, %v1784
        %v1801 = vmul.f32 %v1785, 1.442695
        %v1802 = vpow.pop %v1801
        %v1803 = vmul.f32 %v1786, 1.442695
        %v1804 = vpow.pop %v1803
        %v1805 = vmul.f32 %v1787, 1.442695
        %v1806 = vpow.pop %v1805
        %v1807 = vmul.f32 %v1788, 1.442695
        %v1808 = vpow.pop %v1807
        %v1809 = vmul.f32 %v1789, 1.442695
        %v1810 = vpow.pop %v1809
        %v1811 = vmul.f32 %v1790, 1.442695
        %v1812 = vpow.pop %v1811
        %v1813 = vmul.f32 %v1791, 1.442695
        %v1814 = vpow.pop %v1813
        %v1815 = vmul.f32 %v1792, 1.442695
        %v1816 = vpow.pop %v1815
        %v1817 = vmul.f32 %v1793, 1.442695
        %v1818 = vpow.pop %v1817
        %v1819 = vmul.f32 %v1794, 1.442695
        %v1820 = vpow.pop %v1819
        %v1821 = vmul.f32 %v1795, 1.442695
        %v1822 = vpow.pop %v1821
        %v1823 = vmul.f32 %v1796, 1.442695
        %v1824 = vpow.pop %v1823
        %v1825 = vmul.f32 %v1797, 1.442695
        %v1826 = vpow.pop %v1825
        %v1827 = vmul.f32 %v1798, 1.442695
        %v1828 = vpow.pop %v1827
        %v1829 = vmul.f32 %v1799, 1.442695
        %v1830 = vpow.pop %v1829
        %v1831 = vmul.f32 %v1800, 1.442695
        %v1832 = vpow.pop %v1831
        %1833 = vadd.xlane.f32.xlu0 %v1802
        %v1834 = vpop.xlane.xlu0 %1833
        %1835 = vadd.xlane.f32.xlu0 %v1804
        %v1836 = vpop.xlane.xlu0 %1835
        %1837 = vadd.xlane.f32.xlu0 %v1806
        %v1838 = vpop.xlane.xlu0 %1837
        %1839 = vadd.xlane.f32.xlu0 %v1808
        %v1840 = vpop.xlane.xlu0 %1839
        %1841 = vadd.xlane.f32.xlu0 %v1810
        %v1842 = vpop.xlane.xlu0 %1841
        %1843 = vadd.xlane.f32.xlu0 %v1812
        %v1844 = vpop.xlane.xlu0 %1843
        %1845 = vadd.xlane.f32.xlu0 %v1814
        %v1846 = vpop.xlane.xlu0 %1845
        %1847 = vadd.xlane.f32.xlu0 %v1816
        %v1848 = vpop.xlane.xlu0 %1847
        %1849 = vadd.xlane.f32.xlu0 %v1818
        %v1850 = vpop.xlane.xlu0 %1849
        %1851 = vadd.xlane.f32.xlu0 %v1820
        %v1852 = vpop.xlane.xlu0 %1851
        %1853 = vadd.xlane.f32.xlu0 %v1822
        %v1854 = vpop.xlane.xlu0 %1853
        %1855 = vadd.xlane.f32.xlu0 %v1824
        %v1856 = vpop.xlane.xlu0 %1855
        %1857 = vadd.xlane.f32.xlu0 %v1826
        %v1858 = vpop.xlane.xlu0 %1857
        %1859 = vadd.xlane.f32.xlu0 %v1828
        %v1860 = vpop.xlane.xlu0 %1859
        %1861 = vadd.xlane.f32.xlu0 %v1830
        %v1862 = vpop.xlane.xlu0 %1861
        %1863 = vadd.xlane.f32.xlu0 %v1832
        %v1864 = vpop.xlane.xlu0 %1863
        %v1865 = vrcp.pop %v1834
        %v1866 = vrcp.pop %v1836
        %v1867 = vrcp.pop %v1838
        %v1868 = vrcp.pop %v1840
        %v1869 = vrcp.pop %v1842
        %v1870 = vrcp.pop %v1844
        %v1871 = vrcp.pop %v1846
        %v1872 = vrcp.pop %v1848
        %v1873 = vrcp.pop %v1850
        %v1874 = vrcp.pop %v1852
        %v1875 = vrcp.pop %v1854
        %v1876 = vrcp.pop %v1856
        %v1877 = vrcp.pop %v1858
        %v1878 = vrcp.pop %v1860
        %v1879 = vrcp.pop %v1862
        %v1880 = vrcp.pop %v1864
        %v1881 = vmul.f32 %v1802, %v1865
        %v1882 = vmul.f32 %v1804, %v1866
        %v1883 = vmul.f32 %v1806, %v1867
        %v1884 = vmul.f32 %v1808, %v1868
        %v1885 = vmul.f32 %v1810, %v1869
        %v1886 = vmul.f32 %v1812, %v1870
        %v1887 = vmul.f32 %v1814, %v1871
        %v1888 = vmul.f32 %v1816, %v1872
        %v1889 = vmul.f32 %v1818, %v1873
        %v1890 = vmul.f32 %v1820, %v1874
        %v1891 = vmul.f32 %v1822, %v1875
        %v1892 = vmul.f32 %v1824, %v1876
        %v1893 = vmul.f32 %v1826, %v1877
        %v1894 = vmul.f32 %v1828, %v1878
        %v1895 = vmul.f32 %v1830, %v1879
        %v1896 = vmul.f32 %v1832, %v1880
        %v1897 = vpack.c.bf16 %v1882, %v1881
        %v1898 = vpack.c.bf16 %v1884, %v1883
        %v1899 = vpack.c.bf16 %v1886, %v1885
        %v1900 = vpack.c.bf16 %v1888, %v1887
        %v1901 = vpack.c.bf16 %v1890, %v1889
        %v1902 = vpack.c.bf16 %v1892, %v1891
        %v1903 = vpack.c.bf16 %v1894, %v1893
        %v1904 = vpack.c.bf16 %v1896, %v1895
        %1905 = vrot.lane.b32.xlu0 %v1043, 64
        %v1906 = vpop.permute.xlu0 %1905
        %1907 = vrot.lane.b32.xlu0 %v1044, 64
        %v1908 = vpop.permute.xlu0 %1907
        %1909 = vrot.lane.b32.xlu0 %v1045, 64
        %v1910 = vpop.permute.xlu0 %1909
        %1911 = vrot.lane.b32.xlu0 %v1046, 64
        %v1912 = vpop.permute.xlu0 %1911
        %1913 = vrot.lane.b32.xlu0 %v1047, 64
        %v1914 = vpop.permute.xlu0 %1913
        %1915 = vrot.lane.b32.xlu0 %v1048, 64
        %v1916 = vpop.permute.xlu0 %1915
        %1917 = vrot.lane.b32.xlu0 %v1049, 64
        %v1918 = vpop.permute.xlu0 %1917
        %1919 = vrot.lane.b32.xlu0 %v1050, 64
        %v1920 = vpop.permute.xlu0 %1919
        %1929 = vmatpush.bf16.msra.mxu0 %v1920
        %1930 = vmatpush.bf16.msra.mxu0 %v1918
        %1931 = vmatpush.bf16.msra.mxu0 %v1916
        %1932 = vmatpush.bf16.msra.mxu0 %v1914
        %1933 = vmatpush.bf16.msra.mxu0 %v1912
        %1934 = vmatpush.bf16.msra.mxu0 %v1910
        %1935 = vmatpush.bf16.msra.mxu0 %v1908
        %1936 = vmatpush.bf16.msra.mxu0 %v1906
        %1937 = vmatmul.bf16.gmra.mxu0 %v1897
        %v1938 = vpop.f32.mrf.mxu0
        %v1939 = vadd.f32 0.0, %v1938
        %v1940 = vpop.f32.mrf.mxu0
        %v1941 = vadd.f32 0.0, %v1940
        %1942 = vmatmul.bf16.gmra.mxu0 %v1898
        %v1943 = vpop.f32.mrf.mxu0
        %v1944 = vadd.f32 0.0, %v1943
        %v1945 = vpop.f32.mrf.mxu0
        %v1946 = vadd.f32 0.0, %v1945
        %1947 = vmatmul.bf16.gmra.mxu0 %v1899
        %v1948 = vpop.f32.mrf.mxu0
        %v1949 = vadd.f32 0.0, %v1948
        %v1950 = vpop.f32.mrf.mxu0
        %v1951 = vadd.f32 0.0, %v1950
        %1952 = vmatmul.bf16.gmra.mxu0 %v1900
        %v1953 = vpop.f32.mrf.mxu0
        %v1954 = vadd.f32 0.0, %v1953
        %v1955 = vpop.f32.mrf.mxu0
        %v1956 = vadd.f32 0.0, %v1955
        %1957 = vmatmul.bf16.gmra.mxu0 %v1901
        %v1958 = vpop.f32.mrf.mxu0
        %v1959 = vadd.f32 0.0, %v1958
        %v1960 = vpop.f32.mrf.mxu0
        %v1961 = vadd.f32 0.0, %v1960
        %1962 = vmatmul.bf16.gmra.mxu0 %v1902
        %v1963 = vpop.f32.mrf.mxu0
        %v1964 = vadd.f32 0.0, %v1963
        %v1965 = vpop.f32.mrf.mxu0
        %v1966 = vadd.f32 0.0, %v1965
        %1967 = vmatmul.bf16.gmra.mxu0 %v1903
        %v1968 = vpop.f32.mrf.mxu0
        %v1969 = vadd.f32 0.0, %v1968
        %v1970 = vpop.f32.mrf.mxu0
        %v1971 = vadd.f32 0.0, %v1970
        %1972 = vmatmul.bf16.gmra.mxu0 %v1904
        %v1973 = vpop.f32.mrf.mxu0
        %v1974 = vadd.f32 0.0, %v1973
        %v1975 = vpop.f32.mrf.mxu0
        %v1976 = vadd.f32 0.0, %v1975
        %1977 = vdwg.mxu0
        %v1978 = vpack.c.bf16 %v1939, %v1939
        %v1979 = vpack.c.bf16 %v1941, %v1941
        %v1980 = vpack.c.bf16 %v1944, %v1944
        %v1981 = vpack.c.bf16 %v1946, %v1946
        %v1982 = vpack.c.bf16 %v1949, %v1949
        %v1983 = vpack.c.bf16 %v1951, %v1951
        %v1984 = vpack.c.bf16 %v1954, %v1954
        %v1985 = vpack.c.bf16 %v1956, %v1956
        %v1986 = vpack.c.bf16 %v1959, %v1959
        %v1987 = vpack.c.bf16 %v1961, %v1961
        %v1988 = vpack.c.bf16 %v1964, %v1964
        %v1989 = vpack.c.bf16 %v1966, %v1966
        %v1990 = vpack.c.bf16 %v1969, %v1969
        %v1991 = vpack.c.bf16 %v1971, %v1971
        %v1992 = vpack.c.bf16 %v1974, %v1974
        %v1993 = vpack.c.bf16 %v1976, %v1976
        %2010 = vrot.lane.b32.xlu0 %v1978, 64
        %v2011 = vpop.permute.xlu0 %2010
        %2012 = vrot.lane.b32.xlu0 %v1979, 64
        %v2013 = vpop.permute.xlu0 %2012
        %2014 = vrot.lane.b32.xlu0 %v1980, 64
        %v2015 = vpop.permute.xlu0 %2014
        %2016 = vrot.lane.b32.xlu0 %v1981, 64
        %v2017 = vpop.permute.xlu0 %2016
        %2018 = vrot.lane.b32.xlu0 %v1982, 64
        %v2019 = vpop.permute.xlu0 %2018
        %2020 = vrot.lane.b32.xlu0 %v1983, 64
        %v2021 = vpop.permute.xlu0 %2020
        %2022 = vrot.lane.b32.xlu0 %v1984, 64
        %v2023 = vpop.permute.xlu0 %2022
        %2024 = vrot.lane.b32.xlu0 %v1985, 64
        %v2025 = vpop.permute.xlu0 %2024
        %2026 = vrot.lane.b32.xlu0 %v1986, 64
        %v2027 = vpop.permute.xlu0 %2026
        %2028 = vrot.lane.b32.xlu0 %v1987, 64
        %v2029 = vpop.permute.xlu0 %2028
        %2030 = vrot.lane.b32.xlu0 %v1988, 64
        %v2031 = vpop.permute.xlu0 %2030
        %2032 = vrot.lane.b32.xlu0 %v1989, 64
        %v2033 = vpop.permute.xlu0 %2032
        %2034 = vrot.lane.b32.xlu0 %v1990, 64
        %v2035 = vpop.permute.xlu0 %2034
        %2036 = vrot.lane.b32.xlu0 %v1991, 64
        %v2037 = vpop.permute.xlu0 %2036
        %2038 = vrot.lane.b32.xlu0 %v1992, 64
        %v2039 = vpop.permute.xlu0 %2038
        %2040 = vrot.lane.b32.xlu0 %v1993, 64
        %v2041 = vpop.permute.xlu0 %2040
        %vm2058 = vcmask 781824
        %2059 = vst.msk [vmem:[#allocation2] sm:$0xf] %vm2058, %v2011
        %2060 = vst.msk [vmem:[#allocation2 + $0x4] sm:$0xf] %vm2058, %v2013
        %2061 = vst.msk [vmem:[#allocation2 + $0x8] sm:$0xf] %vm2058, %v2015
        %2062 = vst.msk [vmem:[#allocation2 + $0xc] sm:$0xf] %vm2058, %v2017
        %2063 = vst.msk [vmem:[#allocation2 + $0x10] sm:$0xf] %vm2058, %v2019
        %2064 = vst.msk [vmem:[#allocation2 + $0x14] sm:$0xf] %vm2058, %v2021
        %2065 = vst.msk [vmem:[#allocation2 + $0x18] sm:$0xf] %vm2058, %v2023
        %2066 = vst.msk [vmem:[#allocation2 + $0x1c] sm:$0xf] %vm2058, %v2025
        %2067 = vst.msk [vmem:[#allocation2 + $0x20] sm:$0xf] %vm2058, %v2027
        %2068 = vst.msk [vmem:[#allocation2 + $0x24] sm:$0xf] %vm2058, %v2029
        %2069 = vst.msk [vmem:[#allocation2 + $0x28] sm:$0xf] %vm2058, %v2031
        %2070 = vst.msk [vmem:[#allocation2 + $0x2c] sm:$0xf] %vm2058, %v2033
        %2071 = vst.msk [vmem:[#allocation2 + $0x30] sm:$0xf] %vm2058, %v2035
        %2072 = vst.msk [vmem:[#allocation2 + $0x34] sm:$0xf] %vm2058, %v2037
        %2073 = vst.msk [vmem:[#allocation2 + $0x38] sm:$0xf] %vm2058, %v2039
        %2074 = vst.msk [vmem:[#allocation2 + $0x3c] sm:$0xf] %vm2058, %v2041
        %2075 = vrot.lane.b32.xlu0 %v697, 32
        %v2076 = vpop.permute.xlu0 %2075
        %2077 = vrot.lane.b32.xlu0 %v698, 32
        %v2078 = vpop.permute.xlu0 %2077
        %2079 = vrot.lane.b32.xlu0 %v699, 32
        %v2080 = vpop.permute.xlu0 %2079
        %2081 = vrot.lane.b32.xlu0 %v700, 32
        %v2082 = vpop.permute.xlu0 %2081
        %2083 = vrot.lane.b32.xlu0 %v701, 32
        %v2084 = vpop.permute.xlu0 %2083
        %2085 = vrot.lane.b32.xlu0 %v702, 32
        %v2086 = vpop.permute.xlu0 %2085
        %2087 = vrot.lane.b32.xlu0 %v703, 32
        %v2088 = vpop.permute.xlu0 %2087
        %2089 = vrot.lane.b32.xlu0 %v704, 32
        %v2090 = vpop.permute.xlu0 %2089
        %2091 = vrot.lane.b32.xlu0 %v737, 32
        %v2092 = vpop.permute.xlu0 %2091
        %2093 = vrot.lane.b32.xlu0 %v738, 32
        %v2094 = vpop.permute.xlu0 %2093
        %2095 = vrot.lane.b32.xlu0 %v739, 32
        %v2096 = vpop.permute.xlu0 %2095
        %2097 = vrot.lane.b32.xlu0 %v740, 32
        %v2098 = vpop.permute.xlu0 %2097
        %2099 = vrot.lane.b32.xlu0 %v741, 32
        %v2100 = vpop.permute.xlu0 %2099
        %2101 = vrot.lane.b32.xlu0 %v742, 32
        %v2102 = vpop.permute.xlu0 %2101
        %2103 = vrot.lane.b32.xlu0 %v743, 32
        %v2104 = vpop.permute.xlu0 %2103
        %2105 = vrot.lane.b32.xlu0 %v744, 32
        %v2106 = vpop.permute.xlu0 %2105
        %v2108 = vsel %vm745, %v2076, 0
        %v2111 = vsel %vm745, %v2078, 0
        %v2114 = vsel %vm745, %v2080, 0
        %v2117 = vsel %vm745, %v2082, 0
        %v2120 = vsel %vm745, %v2084, 0
        %v2123 = vsel %vm745, %v2086, 0
        %v2126 = vsel %vm745, %v2088, 0
        %v2129 = vsel %vm745, %v2090, 0
        %v2132 = vsel %vm745, %v2092, 0
        %v2135 = vsel %vm745, %v2094, 0
        %v2138 = vsel %vm745, %v2096, 0
        %v2141 = vsel %vm745, %v2098, 0
        %v2144 = vsel %vm745, %v2100, 0
        %v2147 = vsel %vm745, %v2102, 0
        %v2150 = vsel %vm745, %v2104, 0
        %v2153 = vsel %vm745, %v2106, 0
        %2155 = vmatpush.bf16.xpose.msra.mxu0 %v2153
        %2156 = vmatpush.bf16.xpose.msra.mxu0 %v2150
        %2157 = vmatpush.bf16.xpose.msra.mxu0 %v2147
        %2158 = vmatpush.bf16.xpose.msra.mxu0 %v2144
        %2159 = vmatpush.bf16.xpose.msra.mxu0 %v2141
        %2160 = vmatpush.bf16.xpose.msra.mxu0 %v2138
        %2161 = vmatpush.bf16.xpose.msra.mxu0 %v2135
        %2162 = vmatpush.bf16.xpose.msra.mxu0 %v2132
        %2163 = vmatmul.bf16.gmra.mxu0 %v2108
        %v2164 = vpop.f32.mrf.mxu0
        %v2165 = vadd.f32 0.0, %v2164
        %v2166 = vpop.f32.mrf.mxu0
        %v2167 = vadd.f32 0.0, %v2166
        %2168 = vmatmul.bf16.gmra.mxu0 %v2111
        %v2169 = vpop.f32.mrf.mxu0
        %v2170 = vadd.f32 0.0, %v2169
        %v2171 = vpop.f32.mrf.mxu0
        %v2172 = vadd.f32 0.0, %v2171
        %2173 = vmatmul.bf16.gmra.mxu0 %v2114
        %v2174 = vpop.f32.mrf.mxu0
        %v2175 = vadd.f32 0.0, %v2174
        %v2176 = vpop.f32.mrf.mxu0
        %v2177 = vadd.f32 0.0, %v2176
        %2178 = vmatmul.bf16.gmra.mxu0 %v2117
        %v2179 = vpop.f32.mrf.mxu0
        %v2180 = vadd.f32 0.0, %v2179
        %v2181 = vpop.f32.mrf.mxu0
        %v2182 = vadd.f32 0.0, %v2181
        %2183 = vmatmul.bf16.gmra.mxu0 %v2120
        %v2184 = vpop.f32.mrf.mxu0
        %v2185 = vadd.f32 0.0, %v2184
        %v2186 = vpop.f32.mrf.mxu0
        %v2187 = vadd.f32 0.0, %v2186
        %2188 = vmatmul.bf16.gmra.mxu0 %v2123
        %v2189 = vpop.f32.mrf.mxu0
        %v2190 = vadd.f32 0.0, %v2189
        %v2191 = vpop.f32.mrf.mxu0
        %v2192 = vadd.f32 0.0, %v2191
        %2193 = vmatmul.bf16.gmra.mxu0 %v2126
        %v2194 = vpop.f32.mrf.mxu0
        %v2195 = vadd.f32 0.0, %v2194
        %v2196 = vpop.f32.mrf.mxu0
        %v2197 = vadd.f32 0.0, %v2196
        %2198 = vmatmul.bf16.gmra.mxu0 %v2129
        %v2199 = vpop.f32.mrf.mxu0
        %v2200 = vadd.f32 0.0, %v2199
        %v2201 = vpop.f32.mrf.mxu0
        %v2202 = vadd.f32 0.0, %v2201
        %2203 = vdwg.mxu0
        %v2204 = vsel %vm649, %v2165, -1e+30
        %v2205 = vsel %vm650, %v2167, -1e+30
        %v2206 = vsel %vm651, %v2170, -1e+30
        %v2207 = vsel %vm652, %v2172, -1e+30
        %v2208 = vsel %vm653, %v2175, -1e+30
        %v2209 = vsel %vm654, %v2177, -1e+30
        %v2210 = vsel %vm655, %v2180, -1e+30
        %v2211 = vsel %vm656, %v2182, -1e+30
        %v2212 = vsel %vm657, %v2185, -1e+30
        %v2213 = vsel %vm658, %v2187, -1e+30
        %v2214 = vsel %vm659, %v2190, -1e+30
        %v2215 = vsel %vm660, %v2192, -1e+30
        %v2216 = vsel %vm661, %v2195, -1e+30
        %v2217 = vsel %vm662, %v2197, -1e+30
        %v2218 = vsel %vm663, %v2200, -1e+30
        %v2219 = vsel %vm664, %v2202, -1e+30
        %2220 = vmax.xlane.f32.xlu0 %v2204
        %v2221 = vpop.xlane.xlu0 %2220
        %2222 = vmax.xlane.f32.xlu0 %v2205
        %v2223 = vpop.xlane.xlu0 %2222
        %2224 = vmax.xlane.f32.xlu0 %v2206
        %v2225 = vpop.xlane.xlu0 %2224
        %2226 = vmax.xlane.f32.xlu0 %v2207
        %v2227 = vpop.xlane.xlu0 %2226
        %2228 = vmax.xlane.f32.xlu0 %v2208
        %v2229 = vpop.xlane.xlu0 %2228
        %2230 = vmax.xlane.f32.xlu0 %v2209
        %v2231 = vpop.xlane.xlu0 %2230
        %2232 = vmax.xlane.f32.xlu0 %v2210
        %v2233 = vpop.xlane.xlu0 %2232
        %2234 = vmax.xlane.f32.xlu0 %v2211
        %v2235 = vpop.xlane.xlu0 %2234
        %2236 = vmax.xlane.f32.xlu0 %v2212
        %v2237 = vpop.xlane.xlu0 %2236
        %2238 = vmax.xlane.f32.xlu0 %v2213
        %v2239 = vpop.xlane.xlu0 %2238
        %2240 = vmax.xlane.f32.xlu0 %v2214
        %v2241 = vpop.xlane.xlu0 %2240
        %2242 = vmax.xlane.f32.xlu0 %v2215
        %v2243 = vpop.xlane.xlu0 %2242
        %2244 = vmax.xlane.f32.xlu0 %v2216
        %v2245 = vpop.xlane.xlu0 %2244
        %2246 = vmax.xlane.f32.xlu0 %v2217
        %v2247 = vpop.xlane.xlu0 %2246
        %2248 = vmax.xlane.f32.xlu0 %v2218
        %v2249 = vpop.xlane.xlu0 %2248
        %2250 = vmax.xlane.f32.xlu0 %v2219
        %v2251 = vpop.xlane.xlu0 %2250
        %v2252 = vsub.f32 %v2204, %v2221
        %v2253 = vsub.f32 %v2205, %v2223
        %v2254 = vsub.f32 %v2206, %v2225
        %v2255 = vsub.f32 %v2207, %v2227
        %v2256 = vsub.f32 %v2208, %v2229
        %v2257 = vsub.f32 %v2209, %v2231
        %v2258 = vsub.f32 %v2210, %v2233
        %v2259 = vsub.f32 %v2211, %v2235
        %v2260 = vsub.f32 %v2212, %v2237
        %v2261 = vsub.f32 %v2213, %v2239
        %v2262 = vsub.f32 %v2214, %v2241
        %v2263 = vsub.f32 %v2215, %v2243
        %v2264 = vsub.f32 %v2216, %v2245
        %v2265 = vsub.f32 %v2217, %v2247
        %v2266 = vsub.f32 %v2218, %v2249
        %v2267 = vsub.f32 %v2219, %v2251
        %v2268 = vmul.f32 %v2252, 1.442695
        %v2269 = vpow.pop %v2268
        %v2270 = vmul.f32 %v2253, 1.442695
        %v2271 = vpow.pop %v2270
        %v2272 = vmul.f32 %v2254, 1.442695
        %v2273 = vpow.pop %v2272
        %v2274 = vmul.f32 %v2255, 1.442695
        %v2275 = vpow.pop %v2274
        %v2276 = vmul.f32 %v2256, 1.442695
        %v2277 = vpow.pop %v2276
        %v2278 = vmul.f32 %v2257, 1.442695
        %v2279 = vpow.pop %v2278
        %v2280 = vmul.f32 %v2258, 1.442695
        %v2281 = vpow.pop %v2280
        %v2282 = vmul.f32 %v2259, 1.442695
        %v2283 = vpow.pop %v2282
        %v2284 = vmul.f32 %v2260, 1.442695
        %v2285 = vpow.pop %v2284
        %v2286 = vmul.f32 %v2261, 1.442695
        %v2287 = vpow.pop %v2286
        %v2288 = vmul.f32 %v2262, 1.442695
        %v2289 = vpow.pop %v2288
        %v2290 = vmul.f32 %v2263, 1.442695
        %v2291 = vpow.pop %v2290
        %v2292 = vmul.f32 %v2264, 1.442695
        %v2293 = vpow.pop %v2292
        %v2294 = vmul.f32 %v2265, 1.442695
        %v2295 = vpow.pop %v2294
        %v2296 = vmul.f32 %v2266, 1.442695
        %v2297 = vpow.pop %v2296
        %v2298 = vmul.f32 %v2267, 1.442695
        %v2299 = vpow.pop %v2298
        %2300 = vadd.xlane.f32.xlu0 %v2269
        %v2301 = vpop.xlane.xlu0 %2300
        %2302 = vadd.xlane.f32.xlu0 %v2271
        %v2303 = vpop.xlane.xlu0 %2302
        %2304 = vadd.xlane.f32.xlu0 %v2273
        %v2305 = vpop.xlane.xlu0 %2304
        %2306 = vadd.xlane.f32.xlu0 %v2275
        %v2307 = vpop.xlane.xlu0 %2306
        %2308 = vadd.xlane.f32.xlu0 %v2277
        %v2309 = vpop.xlane.xlu0 %2308
        %2310 = vadd.xlane.f32.xlu0 %v2279
        %v2311 = vpop.xlane.xlu0 %2310
        %2312 = vadd.xlane.f32.xlu0 %v2281
        %v2313 = vpop.xlane.xlu0 %2312
        %2314 = vadd.xlane.f32.xlu0 %v2283
        %v2315 = vpop.xlane.xlu0 %2314
        %2316 = vadd.xlane.f32.xlu0 %v2285
        %v2317 = vpop.xlane.xlu0 %2316
        %2318 = vadd.xlane.f32.xlu0 %v2287
        %v2319 = vpop.xlane.xlu0 %2318
        %2320 = vadd.xlane.f32.xlu0 %v2289
        %v2321 = vpop.xlane.xlu0 %2320
        %2322 = vadd.xlane.f32.xlu0 %v2291
        %v2323 = vpop.xlane.xlu0 %2322
        %2324 = vadd.xlane.f32.xlu0 %v2293
        %v2325 = vpop.xlane.xlu0 %2324
        %2326 = vadd.xlane.f32.xlu0 %v2295
        %v2327 = vpop.xlane.xlu0 %2326
        %2328 = vadd.xlane.f32.xlu0 %v2297
        %v2329 = vpop.xlane.xlu0 %2328
        %2330 = vadd.xlane.f32.xlu0 %v2299
        %v2331 = vpop.xlane.xlu0 %2330
        %v2332 = vrcp.pop %v2301
        %v2333 = vrcp.pop %v2303
        %v2334 = vrcp.pop %v2305
        %v2335 = vrcp.pop %v2307
        %v2336 = vrcp.pop %v2309
        %v2337 = vrcp.pop %v2311
        %v2338 = vrcp.pop %v2313
        %v2339 = vrcp.pop %v2315
        %v2340 = vrcp.pop %v2317
        %v2341 = vrcp.pop %v2319
        %v2342 = vrcp.pop %v2321
        %v2343 = vrcp.pop %v2323
        %v2344 = vrcp.pop %v2325
        %v2345 = vrcp.pop %v2327
        %v2346 = vrcp.pop %v2329
        %v2347 = vrcp.pop %v2331
        %v2348 = vmul.f32 %v2269, %v2332
        %v2349 = vmul.f32 %v2271, %v2333
        %v2350 = vmul.f32 %v2273, %v2334
        %v2351 = vmul.f32 %v2275, %v2335
        %v2352 = vmul.f32 %v2277, %v2336
        %v2353 = vmul.f32 %v2279, %v2337
        %v2354 = vmul.f32 %v2281, %v2338
        %v2355 = vmul.f32 %v2283, %v2339
        %v2356 = vmul.f32 %v2285, %v2340
        %v2357 = vmul.f32 %v2287, %v2341
        %v2358 = vmul.f32 %v2289, %v2342
        %v2359 = vmul.f32 %v2291, %v2343
        %v2360 = vmul.f32 %v2293, %v2344
        %v2361 = vmul.f32 %v2295, %v2345
        %v2362 = vmul.f32 %v2297, %v2346
        %v2363 = vmul.f32 %v2299, %v2347
        %v2364 = vpack.c.bf16 %v2349, %v2348
        %v2365 = vpack.c.bf16 %v2351, %v2350
        %v2366 = vpack.c.bf16 %v2353, %v2352
        %v2367 = vpack.c.bf16 %v2355, %v2354
        %v2368 = vpack.c.bf16 %v2357, %v2356
        %v2369 = vpack.c.bf16 %v2359, %v2358
        %v2370 = vpack.c.bf16 %v2361, %v2360
        %v2371 = vpack.c.bf16 %v2363, %v2362
        %2372 = vrot.lane.b32.xlu0 %v1043, 32
        %v2373 = vpop.permute.xlu0 %2372
        %2374 = vrot.lane.b32.xlu0 %v1044, 32
        %v2375 = vpop.permute.xlu0 %2374
        %2376 = vrot.lane.b32.xlu0 %v1045, 32
        %v2377 = vpop.permute.xlu0 %2376
        %2378 = vrot.lane.b32.xlu0 %v1046, 32
        %v2379 = vpop.permute.xlu0 %2378
        %2380 = vrot.lane.b32.xlu0 %v1047, 32
        %v2381 = vpop.permute.xlu0 %2380
        %2382 = vrot.lane.b32.xlu0 %v1048, 32
        %v2383 = vpop.permute.xlu0 %2382
        %2384 = vrot.lane.b32.xlu0 %v1049, 32
        %v2385 = vpop.permute.xlu0 %2384
        %2386 = vrot.lane.b32.xlu0 %v1050, 32
        %v2387 = vpop.permute.xlu0 %2386
        %2396 = vmatpush.bf16.msra.mxu0 %v2387
        %2397 = vmatpush.bf16.msra.mxu0 %v2385
        %2398 = vmatpush.bf16.msra.mxu0 %v2383
        %2399 = vmatpush.bf16.msra.mxu0 %v2381
        %2400 = vmatpush.bf16.msra.mxu0 %v2379
        %2401 = vmatpush.bf16.msra.mxu0 %v2377
        %2402 = vmatpush.bf16.msra.mxu0 %v2375
        %2403 = vmatpush.bf16.msra.mxu0 %v2373
        %2404 = vmatmul.bf16.gmra.mxu0 %v2364
        %v2405 = vpop.f32.mrf.mxu0
        %v2406 = vadd.f32 0.0, %v2405
        %v2407 = vpop.f32.mrf.mxu0
        %v2408 = vadd.f32 0.0, %v2407
        %2409 = vmatmul.bf16.gmra.mxu0 %v2365
        %v2410 = vpop.f32.mrf.mxu0
        %v2411 = vadd.f32 0.0, %v2410
        %v2412 = vpop.f32.mrf.mxu0
        %v2413 = vadd.f32 0.0, %v2412
        %2414 = vmatmul.bf16.gmra.mxu0 %v2366
        %v2415 = vpop.f32.mrf.mxu0
        %v2416 = vadd.f32 0.0, %v2415
        %v2417 = vpop.f32.mrf.mxu0
        %v2418 = vadd.f32 0.0, %v2417
        %2419 = vmatmul.bf16.gmra.mxu0 %v2367
        %v2420 = vpop.f32.mrf.mxu0
        %v2421 = vadd.f32 0.0, %v2420
        %v2422 = vpop.f32.mrf.mxu0
        %v2423 = vadd.f32 0.0, %v2422
        %2424 = vmatmul.bf16.gmra.mxu0 %v2368
        %v2425 = vpop.f32.mrf.mxu0
        %v2426 = vadd.f32 0.0, %v2425
        %v2427 = vpop.f32.mrf.mxu0
        %v2428 = vadd.f32 0.0, %v2427
        %2429 = vmatmul.bf16.gmra.mxu0 %v2369
        %v2430 = vpop.f32.mrf.mxu0
        %v2431 = vadd.f32 0.0, %v2430
        %v2432 = vpop.f32.mrf.mxu0
        %v2433 = vadd.f32 0.0, %v2432
        %2434 = vmatmul.bf16.gmra.mxu0 %v2370
        %v2435 = vpop.f32.mrf.mxu0
        %v2436 = vadd.f32 0.0, %v2435
        %v2437 = vpop.f32.mrf.mxu0
        %v2438 = vadd.f32 0.0, %v2437
        %2439 = vmatmul.bf16.gmra.mxu0 %v2371
        %v2440 = vpop.f32.mrf.mxu0
        %v2441 = vadd.f32 0.0, %v2440
        %v2442 = vpop.f32.mrf.mxu0
        %v2443 = vadd.f32 0.0, %v2442
        %2444 = vdwg.mxu0
        %v2445 = vpack.c.bf16 %v2406, %v2406
        %v2446 = vpack.c.bf16 %v2408, %v2408
        %v2447 = vpack.c.bf16 %v2411, %v2411
        %v2448 = vpack.c.bf16 %v2413, %v2413
        %v2449 = vpack.c.bf16 %v2416, %v2416
        %v2450 = vpack.c.bf16 %v2418, %v2418
        %v2451 = vpack.c.bf16 %v2421, %v2421
        %v2452 = vpack.c.bf16 %v2423, %v2423
        %v2453 = vpack.c.bf16 %v2426, %v2426
        %v2454 = vpack.c.bf16 %v2428, %v2428
        %v2455 = vpack.c.bf16 %v2431, %v2431
        %v2456 = vpack.c.bf16 %v2433, %v2433
        %v2457 = vpack.c.bf16 %v2436, %v2436
        %v2458 = vpack.c.bf16 %v2438, %v2438
        %v2459 = vpack.c.bf16 %v2441, %v2441
        %v2460 = vpack.c.bf16 %v2443, %v2443
        %2477 = vrot.lane.b32.xlu0 %v2445, 96
        %v2478 = vpop.permute.xlu0 %2477
        %2479 = vrot.lane.b32.xlu0 %v2446, 96
        %v2480 = vpop.permute.xlu0 %2479
        %2481 = vrot.lane.b32.xlu0 %v2447, 96
        %v2482 = vpop.permute.xlu0 %2481
        %2483 = vrot.lane.b32.xlu0 %v2448, 96
        %v2484 = vpop.permute.xlu0 %2483
        %2485 = vrot.lane.b32.xlu0 %v2449, 96
        %v2486 = vpop.permute.xlu0 %2485
        %2487 = vrot.lane.b32.xlu0 %v2450, 96
        %v2488 = vpop.permute.xlu0 %2487
        %2489 = vrot.lane.b32.xlu0 %v2451, 96
        %v2490 = vpop.permute.xlu0 %2489
        %2491 = vrot.lane.b32.xlu0 %v2452, 96
        %v2492 = vpop.permute.xlu0 %2491
        %2493 = vrot.lane.b32.xlu0 %v2453, 96
        %v2494 = vpop.permute.xlu0 %2493
        %2495 = vrot.lane.b32.xlu0 %v2454, 96
        %v2496 = vpop.permute.xlu0 %2495
        %2497 = vrot.lane.b32.xlu0 %v2455, 96
        %v2498 = vpop.permute.xlu0 %2497
        %2499 = vrot.lane.b32.xlu0 %v2456, 96
        %v2500 = vpop.permute.xlu0 %2499
        %2501 = vrot.lane.b32.xlu0 %v2457, 96
        %v2502 = vpop.permute.xlu0 %2501
        %2503 = vrot.lane.b32.xlu0 %v2458, 96
        %v2504 = vpop.permute.xlu0 %2503
        %2505 = vrot.lane.b32.xlu0 %v2459, 96
        %v2506 = vpop.permute.xlu0 %2505
        %2507 = vrot.lane.b32.xlu0 %v2460, 96
        %v2508 = vpop.permute.xlu0 %2507
        %vm2525 = vcmask 1044224
        %2526 = vst.msk [vmem:[#allocation2] sm:$0xf] %vm2525, %v2478
        %2527 = vst.msk [vmem:[#allocation2 + $0x4] sm:$0xf] %vm2525, %v2480
        %2528 = vst.msk [vmem:[#allocation2 + $0x8] sm:$0xf] %vm2525, %v2482
        %2529 = vst.msk [vmem:[#allocation2 + $0xc] sm:$0xf] %vm2525, %v2484
        %2530 = vst.msk [vmem:[#allocation2 + $0x10] sm:$0xf] %vm2525, %v2486
        %2531 = vst.msk [vmem:[#allocation2 + $0x14] sm:$0xf] %vm2525, %v2488
        %2532 = vst.msk [vmem:[#allocation2 + $0x18] sm:$0xf] %vm2525, %v2490
        %2533 = vst.msk [vmem:[#allocation2 + $0x1c] sm:$0xf] %vm2525, %v2492
        %2534 = vst.msk [vmem:[#allocation2 + $0x20] sm:$0xf] %vm2525, %v2494
        %2535 = vst.msk [vmem:[#allocation2 + $0x24] sm:$0xf] %vm2525, %v2496
        %2536 = vst.msk [vmem:[#allocation2 + $0x28] sm:$0xf] %vm2525, %v2498
        %2537 = vst.msk [vmem:[#allocation2 + $0x2c] sm:$0xf] %vm2525, %v2500
        %2538 = vst.msk [vmem:[#allocation2 + $0x30] sm:$0xf] %vm2525, %v2502
        %2539 = vst.msk [vmem:[#allocation2 + $0x34] sm:$0xf] %vm2525, %v2504
        %2540 = vst.msk [vmem:[#allocation2 + $0x38] sm:$0xf] %vm2525, %v2506
        %2541 = vst.msk [vmem:[#allocation2 + $0x3c] sm:$0xf] %vm2525, %v2508
        %v2542 = vld [vmem:[#allocation2] sm:$0xf]
        %v2543 = vld [vmem:[#allocation2 + $0x4] sm:$0xf]
        %v2544 = vld [vmem:[#allocation2 + $0x8] sm:$0xf]
        %v2545 = vld [vmem:[#allocation2 + $0xc] sm:$0xf]
        %v2546 = vld [vmem:[#allocation2 + $0x10] sm:$0xf]
        %v2547 = vld [vmem:[#allocation2 + $0x14] sm:$0xf]
        %v2548 = vld [vmem:[#allocation2 + $0x18] sm:$0xf]
        %v2549 = vld [vmem:[#allocation2 + $0x1c] sm:$0xf]
        %v2550 = vld [vmem:[#allocation2 + $0x20] sm:$0xf]
        %v2551 = vld [vmem:[#allocation2 + $0x24] sm:$0xf]
        %v2552 = vld [vmem:[#allocation2 + $0x28] sm:$0xf]
        %v2553 = vld [vmem:[#allocation2 + $0x2c] sm:$0xf]
        %v2554 = vld [vmem:[#allocation2 + $0x30] sm:$0xf]
        %v2555 = vld [vmem:[#allocation2 + $0x34] sm:$0xf]
        %v2556 = vld [vmem:[#allocation2 + $0x38] sm:$0xf]
        %v2557 = vld [vmem:[#allocation2 + $0x3c] sm:$0xf]
        %v2558 = vld [vmem:[#allocation8] sm:$0xf]
        %v2559 = vld [vmem:[#allocation8 + $0x4] sm:$0xf]
        %v2560 = vld [vmem:[#allocation8 + $0x8] sm:$0xf]
        %v2561 = vld [vmem:[#allocation8 + $0xc] sm:$0xf]
        %v2562 = vld [vmem:[#allocation8 + $0x10] sm:$0xf]
        %v2563 = vld [vmem:[#allocation8 + $0x14] sm:$0xf]
        %v2564 = vld [vmem:[#allocation8 + $0x18] sm:$0xf]
        %v2565 = vld [vmem:[#allocation8 + $0x1c] sm:$0xf]
        %v2566 = vld [vmem:[#allocation8 + $0x20] sm:$0xf]
        %v2567 = vld [vmem:[#allocation8 + $0x24] sm:$0xf]
        %v2568 = vld [vmem:[#allocation8 + $0x28] sm:$0xf]
        %v2569 = vld [vmem:[#allocation8 + $0x2c] sm:$0xf]
        %v2570 = vld [vmem:[#allocation8 + $0x30] sm:$0xf]
        %v2571 = vld [vmem:[#allocation8 + $0x34] sm:$0xf]
        %v2572 = vld [vmem:[#allocation8 + $0x38] sm:$0xf]
        %v2573 = vld [vmem:[#allocation8 + $0x3c] sm:$0xf]
        %v2574 = vld [vmem:[%s3] sm:$0x1]
        %v2576 = vperm.slane %v2574, 0
        %v2594 = vunpack.c.l.b16 %v2542
        %v2595 = vunpack.c.l.b16 %v2543
        %v2596 = vunpack.c.l.b16 %v2544
        %v2597 = vunpack.c.l.b16 %v2545
        %v2598 = vunpack.c.l.b16 %v2546
        %v2599 = vunpack.c.l.b16 %v2547
        %v2600 = vunpack.c.l.b16 %v2548
        %v2601 = vunpack.c.l.b16 %v2549
        %v2602 = vunpack.c.l.b16 %v2550
        %v2603 = vunpack.c.l.b16 %v2551
        %v2604 = vunpack.c.l.b16 %v2552
        %v2605 = vunpack.c.l.b16 %v2553
        %v2606 = vunpack.c.l.b16 %v2554
        %v2607 = vunpack.c.l.b16 %v2555
        %v2608 = vunpack.c.l.b16 %v2556
        %v2609 = vunpack.c.l.b16 %v2557
        %v2610 = vpack.c.b16 %v2595, %v2594
        %v2611 = vpack.c.b16 %v2597, %v2596
        %v2612 = vpack.c.b16 %v2599, %v2598
        %v2613 = vpack.c.b16 %v2601, %v2600
        %v2614 = vpack.c.b16 %v2603, %v2602
        %v2615 = vpack.c.b16 %v2605, %v2604
        %v2616 = vpack.c.b16 %v2607, %v2606
        %v2617 = vpack.c.b16 %v2609, %v2608
        %v2642 = vunpack.c.l.b16 %v2558
        %v2643 = vunpack.c.l.b16 %v2559
        %v2644 = vunpack.c.l.b16 %v2560
        %v2645 = vunpack.c.l.b16 %v2561
        %v2646 = vunpack.c.l.b16 %v2562
        %v2647 = vunpack.c.l.b16 %v2563
        %v2648 = vunpack.c.l.b16 %v2564
        %v2649 = vunpack.c.l.b16 %v2565
        %v2650 = vunpack.c.l.b16 %v2566
        %v2651 = vunpack.c.l.b16 %v2567
        %v2652 = vunpack.c.l.b16 %v2568
        %v2653 = vunpack.c.l.b16 %v2569
        %v2654 = vunpack.c.l.b16 %v2570
        %v2655 = vunpack.c.l.b16 %v2571
        %v2656 = vunpack.c.l.b16 %v2572
        %v2657 = vunpack.c.l.b16 %v2573
        %v2658 = vpack.c.b16 %v2643, %v2642
        %v2659 = vpack.c.b16 %v2645, %v2644
        %v2660 = vpack.c.b16 %v2647, %v2646
        %v2661 = vpack.c.b16 %v2649, %v2648
        %v2662 = vpack.c.b16 %v2651, %v2650
        %v2663 = vpack.c.b16 %v2653, %v2652
        %v2664 = vpack.c.b16 %v2655, %v2654
        %v2665 = vpack.c.b16 %v2657, %v2656
        %2674 = vmatpush.bf16.msra.mxu0 %v2665
        %2675 = vmatpush.bf16.msra.mxu0 %v2664
        %2676 = vmatpush.bf16.msra.mxu0 %v2663
        %2677 = vmatpush.bf16.msra.mxu0 %v2662
        %2678 = vmatpush.bf16.msra.mxu0 %v2661
        %2679 = vmatpush.bf16.msra.mxu0 %v2660
        %2680 = vmatpush.bf16.msra.mxu0 %v2659
        %2681 = vmatpush.bf16.msra.mxu0 %v2658
        %2682 = vmatmul.bf16.gmra.mxu0 %v2610
        %v2683 = vpop.f32.mrf.mxu0
        %v2684 = vadd.f32 %v2576, %v2683
        %v2685 = vpop.f32.mrf.mxu0
        %v2686 = vadd.f32 %v2576, %v2685
        %2687 = vmatmul.bf16.gmra.mxu0 %v2611
        %v2688 = vpop.f32.mrf.mxu0
        %v2689 = vadd.f32 %v2576, %v2688
        %v2690 = vpop.f32.mrf.mxu0
        %v2691 = vadd.f32 %v2576, %v2690
        %2692 = vmatmul.bf16.gmra.mxu0 %v2612
        %v2693 = vpop.f32.mrf.mxu0
        %v2694 = vadd.f32 %v2576, %v2693
        %v2695 = vpop.f32.mrf.mxu0
        %v2696 = vadd.f32 %v2576, %v2695
        %2697 = vmatmul.bf16.gmra.mxu0 %v2613
        %v2698 = vpop.f32.mrf.mxu0
        %v2699 = vadd.f32 %v2576, %v2698
        %v2700 = vpop.f32.mrf.mxu0
        %v2701 = vadd.f32 %v2576, %v2700
        %2702 = vmatmul.bf16.gmra.mxu0 %v2614
        %v2703 = vpop.f32.mrf.mxu0
        %v2704 = vadd.f32 %v2576, %v2703
        %v2705 = vpop.f32.mrf.mxu0
        %v2706 = vadd.f32 %v2576, %v2705
        %2707 = vmatmul.bf16.gmra.mxu0 %v2615
        %v2708 = vpop.f32.mrf.mxu0
        %v2709 = vadd.f32 %v2576, %v2708
        %v2710 = vpop.f32.mrf.mxu0
        %v2711 = vadd.f32 %v2576, %v2710
        %2712 = vmatmul.bf16.gmra.mxu0 %v2616
        %v2713 = vpop.f32.mrf.mxu0
        %v2714 = vadd.f32 %v2576, %v2713
        %v2715 = vpop.f32.mrf.mxu0
        %v2716 = vadd.f32 %v2576, %v2715
        %2717 = vmatmul.bf16.gmra.mxu0 %v2617
        %v2718 = vpop.f32.mrf.mxu0
        %v2719 = vadd.f32 %v2576, %v2718
        %v2720 = vpop.f32.mrf.mxu0
        %v2721 = vadd.f32 %v2576, %v2720
        %2722 = vdwg.mxu0
        %2723 = vst [vmem:[%s250] sm:$0xff] %v2684
        %2724 = vst [vmem:[%s250 + $0x8] sm:$0xff] %v2686
        %2725 = vst [vmem:[%s250 + $0x10] sm:$0xff] %v2689
        %2726 = vst [vmem:[%s250 + $0x18] sm:$0xff] %v2691
        %2727 = vst [vmem:[%s250 + $0x20] sm:$0xff] %v2694
        %2728 = vst [vmem:[%s250 + $0x28] sm:$0xff] %v2696
        %2729 = vst [vmem:[%s250 + $0x30] sm:$0xff] %v2699
        %2730 = vst [vmem:[%s250 + $0x38] sm:$0xff] %v2701
        %2731 = vst [vmem:[%s250 + $0x40] sm:$0xff] %v2704
        %2732 = vst [vmem:[%s250 + $0x48] sm:$0xff] %v2706
        %2733 = vst [vmem:[%s250 + $0x50] sm:$0xff] %v2709
        %2734 = vst [vmem:[%s250 + $0x58] sm:$0xff] %v2711
        %2735 = vst [vmem:[%s250 + $0x60] sm:$0xff] %v2714
        %2736 = vst [vmem:[%s250 + $0x68] sm:$0xff] %v2716
        %2737 = vst [vmem:[%s250 + $0x70] sm:$0xff] %v2719
        %2738 = vst [vmem:[%s250 + $0x78] sm:$0xff] %v2721
        %s2739 = sand.u32 %s119, 1
        %s2740 = scalar_lea.sflag [#allocation5], %s2739
        %s2741 = sand.u32 %s119, 1
        %s2742 = smul.addr %s2741, 128
        %s2743 = scalar_lea.vmem [#allocation9], %s2742
        // Predicated region
        $region49: #{multi_head_attention.1} parent=35 // pred_check
          %p2744 = pneg %p129
        $region50: #{multi_head_attention.1} parent=35 // pred_check_branch
          %2746 = sbr.rel (%p2744) target = $region52
        $region51: #{multi_head_attention.1} parent=35 // pred_region
          %2748 = vsyncadd %s2740, 0
          %s2749 = smul.addr %s22, 16
          %s2750 = smul.addr %s2749, 8
          %s2751 = scalar_lea.hbm %s4, %s2750
          %s2752 = sshll.u32 %s2743, 4
          %s2753 = int_to_ptr.vmem [resolvable:$true] %s2752
          %s2754 = sshll.u32 %s2751, 4
          %s2755 = int_to_ptr.hbm [resolvable:$true] %s2754
          %2760 = dma.vmem_to_hbm [thread:$0]  %s2753, 2048, %s2755, %s2740, 128, 128, 8
        $region52: #{multi_head_attention.1} parent=35 // pred_fallthru
          _
      $region36: #{multi_head_attention.1} parent=5 // pred_fallthru
        _
      %p2761 = scmp.le.s32.totalorder 2, %s17
      // Predicated region
      $region53: #{multi_head_attention.1} parent=5 // pred_check
        %p2762 = pneg %p2761
      $region54: #{multi_head_attention.1} parent=5 // pred_check_branch
        %2764 = sbr.rel (%p2762) target = $region56
      $region55: #{multi_head_attention.1} parent=5 // pred_region
        %s2765 = ssub.s32 %s17, 2
        // Predicated region
        $region57: #{multi_head_attention.1} parent=55 // pred_check
          %p2766 = pneg %p135
        $region58: #{multi_head_attention.1} parent=55 // pred_check_branch
          %2768 = sbr.rel (%p2766) target = $region60
        $region59: #{multi_head_attention.1} parent=55 // pred_region
          %s2769 = sand.u32 %s120, 1
          %s2770 = scalar_lea.sflag [#allocation5], %s2769
          %s2771 = sand.u32 %s120, 1
          %s2772 = smul.addr %s2771, 128
          %s2773 = scalar_lea.vmem [#allocation9], %s2772
          %2775 = dma.done %s2770, 2048
        $region60: #{multi_head_attention.1} parent=55 // pred_fallthru
          _
      $region56: #{multi_head_attention.1} parent=5 // pred_fallthru
        _
    $region6: #{multi_head_attention.1} parent=1 // loop_footer
      %s21 = sadd.s32 1, %s17
    $region7: #{multi_head_attention.1} parent=1 // loop_footer_branch
      %16 = sbr.rel target = $region3
    $region8: #{multi_head_attention.1} parent=1 // loop_exit
      _
    %2776 = vsyncpa [#allocation4], 1
    %s2777 = scalar_lea.sflag [#allocation4], 1
    %2778 = vsyncpa %s2777, 1
    %2779 = vsyncpa [#allocation7], 1
    %2780 = vsyncpa [#allocation5], 1
    %s2781 = scalar_lea.sflag [#allocation5], 1
    %2782 = vsyncpa %s2781, 1

</llo_original>
